<compile_context>
chip_gen: v7x
topology: tpu7x:2x2x1
jax: 0.10.0
libtpu: 0.0.40
codegen_flags: <defaults>
</compile_context>

<pallas_src>
import jax
import jax.numpy as jnp
from jax.experimental import pallas as pl
from jax.experimental.pallas import tpu as pltpu


NUM_HEADS = 2  # head 0 = occupancy decoder, head 1 = keypoint/saliency decoder


# ----------------------------------------------------------------------------
# Fused kernel: PointNet-style encoder (3 -> H -> C, max-pool over points) plus
# BOTH LocalDecoder-style conditioned ResNet-MLP heads, all batches at once.
# Layout is transposed: feature axis on sublanes, point/query axis on lanes,
# batches concatenated along the lane axis.
# ----------------------------------------------------------------------------
def snake_kernel(x_ref, p_ref,
                 enc_w1_ref, enc_b1_ref, enc_w2_ref, enc_b2_ref,
                 dec_wp_ref, dec_wc_ref, dec_w0_ref, dec_w1_ref,
                 dec_wo_ref, dec_bias_ref,
                 occ_ref, sal_ref):
    B, T = occ_ref.shape
    N = x_ref.shape[1] // B
    H2 = dec_wp_ref.shape[0]          # 2 * hidden (both decoder heads stacked)

    # ---------------- encoder over ALL batches at once (lane-concat) --------
    # x_ref is (3, B*N): batch-major along the lane axis.
    h = jnp.dot(enc_w1_ref[...], x_ref[...],
                preferred_element_type=jnp.float32) + enc_b1_ref[...]
    h = jnp.maximum(h, 0.0)                                           # (H, B*N)
    f = jnp.dot(enc_w2_ref[...], h,
                preferred_element_type=jnp.float32) + enc_b2_ref[...]  # (C, B*N)

    # Segmented max-pool over the N point-lanes of each batch -> (C, B).
    c_code = jnp.concatenate(
        [jnp.max(f[:, b * N:(b + 1) * N], axis=-1, keepdims=True) for b in range(B)],
        axis=-1)                                                      # (C, B)

    # ---------------- both decoder heads, all batches, fused ----------------
    # ONE stacked matmul for the c-conditioning of both heads and all batches.
    c_cond = jnp.dot(dec_wc_ref[...], c_code,
                     preferred_element_type=jnp.float32)              # (2H, B)
    # Broadcast each batch's column across its T query lanes -> (2H, B*T).
    c_bcast = jnp.concatenate(
        [jnp.broadcast_to(c_cond[:, b:b + 1], (H2, T)) for b in range(B)],
        axis=-1)

    # Packed bias contract (built in snake_forward, keep the two sites in sync):
    #   col0 = bp + bc (fc_p and fc_c biases are always summed),
    #   col1 = b0, col2 = b1, col3 rows [0, 1] = per-head output bias bo.
    bias = dec_bias_ref[...]                                          # (2H, 4)

    net = (jnp.dot(dec_wp_ref[...], p_ref[...],
                   preferred_element_type=jnp.float32)
           + c_bcast + bias[:, 0:1])                                  # (2H, B*T)

    # ResnetBlockFC for both heads in one pass (block-diagonal 2Hx2H weights):
    #   x + fc1(relu(fc0(relu(x))))
    dx = jnp.dot(dec_w0_ref[...], jnp.maximum(net, 0.0),
                 preferred_element_type=jnp.float32) + bias[:, 1:2]
    dx = jnp.dot(dec_w1_ref[...], jnp.maximum(dx, 0.0),
                 preferred_element_type=jnp.float32) + bias[:, 2:3]
    net = net + dx

    logits = (jnp.dot(dec_wo_ref[...], jnp.maximum(net, 0.0),
                      preferred_element_type=jnp.float32)
              + bias[0:2, 3:4])                                       # (2, B*T)

    occ_all = jax.nn.sigmoid(logits[0:1, :])                          # (1, B*T)
    s = jax.nn.softplus(logits[1:2, :])
    sal_all = s * pl.reciprocal(s + 1.0, approx=True)                 # (1, B*T)

    # Direct lane-dense row stores (no sublane concatenate in the epilogue).
    for b in range(B):
        occ_ref[pl.ds(b, 1), :] = occ_all[:, b * T:(b + 1) * T].astype(occ_ref.dtype)
        sal_ref[pl.ds(b, 1), :] = sal_all[:, b * T:(b + 1) * T].astype(sal_ref.dtype)


# ----------------------------------------------------------------------------
# Wrapper
# ----------------------------------------------------------------------------
def _full_spec(shape):
    return pl.BlockSpec(shape, lambda i, _s=shape: tuple(0 for _ in _s))


def snake_forward(inputs, p, params, index="1"):
    """Pallas equivalent of SNAKE.forward (sigmoid=True, return_desc=False)."""
    B, N, _ = inputs.shape
    _, T, _ = p.shape
    H = params["enc_w1"].shape[0]
    C = params["enc_w2"].shape[0]
    H2 = NUM_HEADS * H

    # Layout plumbing: batch-concatenate along the lane (last) axis.
    x_t = jnp.transpose(inputs, (2, 0, 1)).reshape(3, B * N).astype(jnp.float32)
    p_t = jnp.transpose(p, (2, 0, 1)).reshape(3, B * T).astype(jnp.float32)

    # Head packing: rows 0..H-1 = occupancy head, rows H..2H-1 = saliency head.
    # fc0/fc1 become block-diagonal so the heads never mix; fc_out becomes a
    # (2, 2H) block-row matrix producing logits row 0 = occ, row 1 = sal.
    dec_wp = params["dec_wp"].reshape(H2, 3).astype(jnp.float32)
    dec_wc = params["dec_wc"].reshape(H2, C).astype(jnp.float32)

    zhh = jnp.zeros((H, H), jnp.float32)

    def _blockdiag(w):  # (2, H, H) -> (2H, 2H)
        return jnp.concatenate(
            [jnp.concatenate([w[0], zhh], axis=1),
             jnp.concatenate([zhh, w[1]], axis=1)], axis=0)

    dec_w0 = _blockdiag(params["dec_w0"].astype(jnp.float32))
    dec_w1 = _blockdiag(params["dec_w1"].astype(jnp.float32))

    z1h = jnp.zeros((1, H), jnp.float32)
    dec_wo = jnp.concatenate(
        [jnp.concatenate([params["dec_wo"][0], z1h], axis=1),
         jnp.concatenate([z1h, params["dec_wo"][1]], axis=1)], axis=0)  # (2, 2H)

    # Packed bias contract (consumed by snake_kernel — keep in sync):
    #   col0 = bp + bc, col1 = b0, col2 = b1, col3 rows [0,1] = per-head bo.
    dec_bias = jnp.zeros((H2, 4), jnp.float32)
    dec_bias = dec_bias.at[:, 0].set(
        (params["dec_bp"] + params["dec_bc"]).reshape(H2))
    dec_bias = dec_bias.at[:, 1].set(params["dec_b0"].reshape(H2))
    dec_bias = dec_bias.at[:, 2].set(params["dec_b1"].reshape(H2))
    dec_bias = dec_bias.at[0:NUM_HEADS, 3].set(params["dec_bo"].reshape(NUM_HEADS))
    assert dec_bias.shape == (H2, 4)

    occ, sal = pl.pallas_call(
        snake_kernel,
        out_shape=(jax.ShapeDtypeStruct((B, T), jnp.float32),
                   jax.ShapeDtypeStruct((B, T), jnp.float32)),
        grid=(1,),
        in_specs=[
            _full_spec((3, B * N)),
            _full_spec((3, B * T)),
            _full_spec((H, 3)),
            _full_spec((H, 1)),
            _full_spec((C, H)),
            _full_spec((C, 1)),
            _full_spec((H2, 3)),
            _full_spec((H2, C)),
            _full_spec((H2, H2)),
            _full_spec((H2, H2)),
            _full_spec((NUM_HEADS, H2)),
            _full_spec((H2, 4)),
        ],
        out_specs=(_full_spec((B, T)), _full_spec((B, T))),
        compiler_params=pltpu.CompilerParams(dimension_semantics=("arbitrary",)),
    )(x_t, p_t,
      params["enc_w1"], params["enc_b1"], params["enc_w2"], params["enc_b2"],
      dec_wp, dec_wc, dec_w0, dec_w1, dec_wo, dec_bias)

    outputs = {}
    # TODO(synk): cfg['sigmoid']=False returns a torch Bernoulli distribution object
    # and return_desc=True returns decoder features; neither has an array-level
    # Pallas equivalent — only the sigmoid + 1-channel-saliency branch is implemented.
    outputs["occ" + index] = occ
    outputs["sal" + index] = sal
    return outputs


# ----------------------------------------------------------------------------
# Deterministic parameter construction (weights stored pre-transposed: (out, in))
# ----------------------------------------------------------------------------
def init_params(key, c_dim=32, hidden=32):
    ks = jax.random.split(key, 6)
    s = 0.1

    def w(k, shape):
        return (s * jax.random.normal(k, shape)).astype(jnp.float32)

    def dec_params(kbase):
        kk = jax.random.split(kbase, 10)
        return dict(
            wp=w(kk[0], (hidden, 3)), bp=w(kk[1], (hidden,)),
            wc=w(kk[2], (hidden, c_dim)), bc=w(kk[3], (hidden,)),
            w0=w(kk[4], (hidden, hidden)), b0=w(kk[5], (hidden,)),
            w1=w(kk[6], (hidden, hidden)), b1=w(kk[7], (hidden,)),
            wo=w(kk[8], (1, hidden)), bo=w(kk[9], (1,)))

    occ = dec_params(ks[4])
    sal = dec_params(ks[5])

    def stack(name):
        return jnp.stack([occ[name], sal[name]], axis=0)

    return dict(
        enc_w1=w(ks[0], (hidden, 3)),
        enc_b1=w(ks[1], (hidden, 1)),
        enc_w2=w(ks[2], (c_dim, hidden)),
        enc_b2=w(ks[3], (c_dim, 1)),
        dec_wp=stack("wp"), dec_bp=stack("bp"),
        dec_wc=stack("wc"), dec_bc=stack("bc"),
        dec_w0=stack("w0"), dec_b0=stack("b0"),
        dec_w1=stack("w1"), dec_b1=stack("b1"),
        dec_wo=stack("wo"), dec_bo=stack("bo"),
    )


# ----------------------------------------------------------------------------
# Pure-JAX reference (channels-last math, identical to the torch module)
# ----------------------------------------------------------------------------
def snake_reference(inputs, p, params):
    def mm(a, b):
        return jnp.matmul(a, b, precision=jax.lax.Precision.HIGHEST)

    h = jnp.maximum(mm(inputs, params["enc_w1"].T) + params["enc_b1"][:, 0], 0.0)
    f = mm(h, params["enc_w2"].T) + params["enc_b2"][:, 0]
    c = jnp.max(f, axis=1)                                            # (B, C)

    def dec(head):
        wp = params["dec_wp"][head]; bp = params["dec_bp"][head]
        wc = params["dec_wc"][head]; bc = params["dec_bc"][head]
        w0 = params["dec_w0"][head]; b0 = params["dec_b0"][head]
        w1 = params["dec_w1"][head]; b1 = params["dec_b1"][head]
        wo = params["dec_wo"][head]; bo = params["dec_bo"][head]
        net = mm(p, wp.T) + bp + (mm(c, wc.T) + bc)[:, None, :]
        dx = mm(jnp.maximum(net, 0.0), w0.T) + b0
        dx = mm(jnp.maximum(dx, 0.0), w1.T) + b1
        net = net + dx
        logits = mm(jnp.maximum(net, 0.0), wo.T) + bo                 # (B, T, 1)
        return logits[..., 0]

    occ = jax.nn.sigmoid(dec(0))
    s = jax.nn.softplus(dec(1))
    sal = s / (s + 1.0)
    return occ, sal


if __name__ == "__main__":
    key = jax.random.PRNGKey(0)
    k_in, k_p, k_par = jax.random.split(key, 3)

    B, N, T = 2, 128, 128          # batch, input points, query points (lane-dense)
    c_dim, hidden = 32, 32

    inputs = jax.random.uniform(k_in, (B, N, 3), dtype=jnp.float32) - 0.5   # point cloud
    p = jax.random.uniform(k_p, (B, T, 3), dtype=jnp.float32) - 0.5         # query points
    params = init_params(k_par, c_dim=c_dim, hidden=hidden)

    outputs = snake_forward(inputs, p, params, index="1")
    outputs = jax.block_until_ready(outputs)

    occ, sal = outputs["occ1"], outputs["sal1"]
    assert occ.shape == (B, T)
    assert sal.shape == (B, T)
    assert bool(jnp.all(jnp.isfinite(occ)))
    assert bool(jnp.all(jnp.isfinite(sal)))
    assert bool(jnp.all((occ >= 0) & (occ <= 1)))
    assert bool(jnp.all((sal >= 0) & (sal <= 1)))

    # Numerical check against the pure-JAX reference.
    occ_ref, sal_ref = snake_reference(inputs, p, params)
    assert float(jnp.max(jnp.abs(occ - occ_ref))) < 5e-3
    assert float(jnp.max(jnp.abs(sal - sal_ref))) < 5e-3

    print("KERNEL_OK")
</pallas_src>

<mosaic_0001>
module attributes {stable_mosaic.version = 11 : i64} {
  func.func @snake_kernel(%arg0: i32, %arg1: memref<3x256xf32, #tpu.memory_space<vmem>>, %arg2: memref<3x256xf32, #tpu.memory_space<vmem>>, %arg3: memref<32x3xf32, #tpu.memory_space<vmem>>, %arg4: memref<32x1xf32, #tpu.memory_space<vmem>>, %arg5: memref<32x32xf32, #tpu.memory_space<vmem>>, %arg6: memref<32x1xf32, #tpu.memory_space<vmem>>, %arg7: memref<64x3xf32, #tpu.memory_space<vmem>>, %arg8: memref<64x32xf32, #tpu.memory_space<vmem>>, %arg9: memref<64x64xf32, #tpu.memory_space<vmem>>, %arg10: memref<64x64xf32, #tpu.memory_space<vmem>>, %arg11: memref<2x64xf32, #tpu.memory_space<vmem>>, %arg12: memref<64x4xf32, #tpu.memory_space<vmem>>, %arg13: memref<2x128xf32, #tpu.memory_space<vmem>>, %arg14: memref<2x128xf32, #tpu.memory_space<vmem>>) attributes {dimension_semantics = [#tpu.dimension_semantics<arbitrary>], iteration_bounds = array<i64: 1>, scalar_prefetch = 0 : i64, scratch_operands = 0 : i64, tpu.core_type = #tpu.core_type<tc>, window_params = [{pipeline_mode = #tpu.pipeline_mode<synchronous>, transform_indices = @transform_0, window_bounds = array<i64: 3, 256>}, {pipeline_mode = #tpu.pipeline_mode<synchronous>, transform_indices = @transform_1, window_bounds = array<i64: 3, 256>}, {pipeline_mode = #tpu.pipeline_mode<synchronous>, transform_indices = @transform_2, window_bounds = array<i64: 32, 3>}, {pipeline_mode = #tpu.pipeline_mode<synchronous>, transform_indices = @transform_3, window_bounds = array<i64: 32, 1>}, {pipeline_mode = #tpu.pipeline_mode<synchronous>, transform_indices = @transform_4, window_bounds = array<i64: 32, 32>}, {pipeline_mode = #tpu.pipeline_mode<synchronous>, transform_indices = @transform_5, window_bounds = array<i64: 32, 1>}, {pipeline_mode = #tpu.pipeline_mode<synchronous>, transform_indices = @transform_6, window_bounds = array<i64: 64, 3>}, {pipeline_mode = #tpu.pipeline_mode<synchronous>, transform_indices = @transform_7, window_bounds = array<i64: 64, 32>}, {pipeline_mode = #tpu.pipeline_mode<synchronous>, transform_indices = @transform_8, window_bounds = array<i64: 64, 64>}, {pipeline_mode = #tpu.pipeline_mode<synchronous>, transform_indices = @transform_9, window_bounds = array<i64: 64, 64>}, {pipeline_mode = #tpu.pipeline_mode<synchronous>, transform_indices = @transform_10, window_bounds = array<i64: 2, 64>}, {pipeline_mode = #tpu.pipeline_mode<synchronous>, transform_indices = @transform_11, window_bounds = array<i64: 64, 4>}, {pipeline_mode = #tpu.pipeline_mode<synchronous>, transform_indices = @transform_12, window_bounds = array<i64: 2, 128>}, {pipeline_mode = #tpu.pipeline_mode<synchronous>, transform_indices = @transform_13, window_bounds = array<i64: 2, 128>}]} {
    %c0 = arith.constant 0 : index
    %c0_0 = arith.constant 0 : index
    %0 = vector.load %arg3[%c0, %c0_0] : memref<32x3xf32, #tpu.memory_space<vmem>>, vector<32x3xf32>
    %c0_1 = arith.constant 0 : index
    %c0_2 = arith.constant 0 : index
    %1 = vector.load %arg1[%c0_1, %c0_2] : memref<3x256xf32, #tpu.memory_space<vmem>>, vector<3x256xf32>
    %cst = arith.constant dense<0.000000e+00> : vector<32x256xf32>
    %2 = tpu.matmul %0, %1, %cst {dimension_numbers = #tpu.dot_dimension_numbers<[1], [0], [0], [1], [0, 0, 1, 1], [], []>} : vector<32x3xf32>, vector<3x256xf32>, vector<32x256xf32> -> vector<32x256xf32>
    %c0_3 = arith.constant 0 : index
    %c0_4 = arith.constant 0 : index
    %3 = vector.load %arg4[%c0_3, %c0_4] : memref<32x1xf32, #tpu.memory_space<vmem>>, vector<32x1xf32>
    %4 = vector.broadcast %3 : vector<32x1xf32> to vector<32x256xf32>
    %5 = arith.addf %2, %4 : vector<32x256xf32>
    %cst_5 = arith.constant 0.000000e+00 : f32
    %6 = vector.broadcast %cst_5 : f32 to vector<32x256xf32>
    %7 = arith.maximumf %5, %6 : vector<32x256xf32>
    %c0_6 = arith.constant 0 : index
    %c0_7 = arith.constant 0 : index
    %8 = vector.load %arg5[%c0_6, %c0_7] : memref<32x32xf32, #tpu.memory_space<vmem>>, vector<32x32xf32>
    %cst_8 = arith.constant dense<0.000000e+00> : vector<32x256xf32>
    %9 = tpu.matmul %8, %7, %cst_8 {dimension_numbers = #tpu.dot_dimension_numbers<[1], [0], [0], [1], [0, 0, 1, 1], [], []>} : vector<32x32xf32>, vector<32x256xf32>, vector<32x256xf32> -> vector<32x256xf32>
    %c0_9 = arith.constant 0 : index
    %c0_10 = arith.constant 0 : index
    %10 = vector.load %arg6[%c0_9, %c0_10] : memref<32x1xf32, #tpu.memory_space<vmem>>, vector<32x1xf32>
    %11 = vector.broadcast %10 : vector<32x1xf32> to vector<32x256xf32>
    %12 = arith.addf %9, %11 : vector<32x256xf32>
    %13 = vector.extract_strided_slice %12 {offsets = [0, 0], sizes = [32, 128], strides = [1, 1]} : vector<32x256xf32> to vector<32x128xf32>
    %cst_11 = arith.constant dense<0xFF800000> : vector<32xf32>
    %14 = vector.multi_reduction <maximumf>, %13, %cst_11 [1] : vector<32x128xf32> to vector<32xf32>
    %15 = vector.shape_cast %14 : vector<32xf32> to vector<32x1xf32>
    %16 = vector.extract_strided_slice %12 {offsets = [0, 128], sizes = [32, 128], strides = [1, 1]} : vector<32x256xf32> to vector<32x128xf32>
    %cst_12 = arith.constant dense<0xFF800000> : vector<32xf32>
    %17 = vector.multi_reduction <maximumf>, %16, %cst_12 [1] : vector<32x128xf32> to vector<32xf32>
    %18 = vector.shape_cast %17 : vector<32xf32> to vector<32x1xf32>
    %19 = tpu.concatenate %15, %18 in 1 : vector<32x1xf32>, vector<32x1xf32> -> vector<32x2xf32>
    %c0_13 = arith.constant 0 : index
    %c0_14 = arith.constant 0 : index
    %20 = vector.load %arg8[%c0_13, %c0_14] : memref<64x32xf32, #tpu.memory_space<vmem>>, vector<64x32xf32>
    %cst_15 = arith.constant dense<0.000000e+00> : vector<64x2xf32>
    %21 = tpu.matmul %20, %19, %cst_15 {dimension_numbers = #tpu.dot_dimension_numbers<[1], [0], [0], [1], [0, 0, 1, 1], [], []>} : vector<64x32xf32>, vector<32x2xf32>, vector<64x2xf32> -> vector<64x2xf32>
    %22 = vector.extract_strided_slice %21 {offsets = [0, 0], sizes = [64, 1], strides = [1, 1]} : vector<64x2xf32> to vector<64x1xf32>
    %23 = vector.shape_cast %22 : vector<64x1xf32> to vector<64x1xf32>
    %24 = vector.broadcast %23 : vector<64x1xf32> to vector<64x128xf32>
    %25 = vector.extract_strided_slice %21 {offsets = [0, 1], sizes = [64, 1], strides = [1, 1]} : vector<64x2xf32> to vector<64x1xf32>
    %26 = vector.shape_cast %25 : vector<64x1xf32> to vector<64x1xf32>
    %27 = vector.broadcast %26 : vector<64x1xf32> to vector<64x128xf32>
    %28 = tpu.concatenate %24, %27 in 1 : vector<64x128xf32>, vector<64x128xf32> -> vector<64x256xf32>
    %c0_16 = arith.constant 0 : index
    %c0_17 = arith.constant 0 : index
    %29 = vector.load %arg12[%c0_16, %c0_17] : memref<64x4xf32, #tpu.memory_space<vmem>>, vector<64x4xf32>
    %c0_18 = arith.constant 0 : index
    %c0_19 = arith.constant 0 : index
    %30 = vector.load %arg7[%c0_18, %c0_19] : memref<64x3xf32, #tpu.memory_space<vmem>>, vector<64x3xf32>
    %c0_20 = arith.constant 0 : index
    %c0_21 = arith.constant 0 : index
    %31 = vector.load %arg2[%c0_20, %c0_21] : memref<3x256xf32, #tpu.memory_space<vmem>>, vector<3x256xf32>
    %cst_22 = arith.constant dense<0.000000e+00> : vector<64x256xf32>
    %32 = tpu.matmul %30, %31, %cst_22 {dimension_numbers = #tpu.dot_dimension_numbers<[1], [0], [0], [1], [0, 0, 1, 1], [], []>} : vector<64x3xf32>, vector<3x256xf32>, vector<64x256xf32> -> vector<64x256xf32>
    %33 = arith.addf %32, %28 : vector<64x256xf32>
    %34 = vector.extract_strided_slice %29 {offsets = [0, 0], sizes = [64, 1], strides = [1, 1]} : vector<64x4xf32> to vector<64x1xf32>
    %35 = vector.broadcast %34 : vector<64x1xf32> to vector<64x256xf32>
    %36 = arith.addf %33, %35 : vector<64x256xf32>
    %c0_23 = arith.constant 0 : index
    %c0_24 = arith.constant 0 : index
    %37 = vector.load %arg9[%c0_23, %c0_24] : memref<64x64xf32, #tpu.memory_space<vmem>>, vector<64x64xf32>
    %cst_25 = arith.constant 0.000000e+00 : f32
    %38 = vector.broadcast %cst_25 : f32 to vector<64x256xf32>
    %39 = arith.maximumf %36, %38 : vector<64x256xf32>
    %cst_26 = arith.constant dense<0.000000e+00> : vector<64x256xf32>
    %40 = tpu.matmul %37, %39, %cst_26 {dimension_numbers = #tpu.dot_dimension_numbers<[1], [0], [0], [1], [0, 0, 1, 1], [], []>} : vector<64x64xf32>, vector<64x256xf32>, vector<64x256xf32> -> vector<64x256xf32>
    %41 = vector.extract_strided_slice %29 {offsets = [0, 1], sizes = [64, 1], strides = [1, 1]} : vector<64x4xf32> to vector<64x1xf32>
    %42 = vector.broadcast %41 : vector<64x1xf32> to vector<64x256xf32>
    %43 = arith.addf %40, %42 : vector<64x256xf32>
    %c0_27 = arith.constant 0 : index
    %c0_28 = arith.constant 0 : index
    %44 = vector.load %arg10[%c0_27, %c0_28] : memref<64x64xf32, #tpu.memory_space<vmem>>, vector<64x64xf32>
    %cst_29 = arith.constant 0.000000e+00 : f32
    %45 = vector.broadcast %cst_29 : f32 to vector<64x256xf32>
    %46 = arith.maximumf %43, %45 : vector<64x256xf32>
    %cst_30 = arith.constant dense<0.000000e+00> : vector<64x256xf32>
    %47 = tpu.matmul %44, %46, %cst_30 {dimension_numbers = #tpu.dot_dimension_numbers<[1], [0], [0], [1], [0, 0, 1, 1], [], []>} : vector<64x64xf32>, vector<64x256xf32>, vector<64x256xf32> -> vector<64x256xf32>
    %48 = vector.extract_strided_slice %29 {offsets = [0, 2], sizes = [64, 1], strides = [1, 1]} : vector<64x4xf32> to vector<64x1xf32>
    %49 = vector.broadcast %48 : vector<64x1xf32> to vector<64x256xf32>
    %50 = arith.addf %47, %49 : vector<64x256xf32>
    %51 = arith.addf %36, %50 : vector<64x256xf32>
    %c0_31 = arith.constant 0 : index
    %c0_32 = arith.constant 0 : index
    %52 = vector.load %arg11[%c0_31, %c0_32] : memref<2x64xf32, #tpu.memory_space<vmem>>, vector<2x64xf32>
    %cst_33 = arith.constant 0.000000e+00 : f32
    %53 = vector.broadcast %cst_33 : f32 to vector<64x256xf32>
    %54 = arith.maximumf %51, %53 : vector<64x256xf32>
    %cst_34 = arith.constant dense<0.000000e+00> : vector<2x256xf32>
    %55 = tpu.matmul %52, %54, %cst_34 {dimension_numbers = #tpu.dot_dimension_numbers<[1], [0], [0], [1], [0, 0, 1, 1], [], []>} : vector<2x64xf32>, vector<64x256xf32>, vector<2x256xf32> -> vector<2x256xf32>
    %56 = vector.extract_strided_slice %29 {offsets = [0, 3], sizes = [2, 1], strides = [1, 1]} : vector<64x4xf32> to vector<2x1xf32>
    %57 = vector.broadcast %56 : vector<2x1xf32> to vector<2x256xf32>
    %58 = arith.addf %55, %57 : vector<2x256xf32>
    %59 = vector.extract_strided_slice %58 {offsets = [0, 0], sizes = [1, 256], strides = [1, 1]} : vector<2x256xf32> to vector<1x256xf32>
    %60 = arith.negf %59 : vector<1x256xf32>
    %61 = math.exp %60 : vector<1x256xf32>
    %cst_35 = arith.constant 1.000000e+00 : f32
    %62 = vector.broadcast %cst_35 : f32 to vector<1x256xf32>
    %63 = arith.addf %62, %61 : vector<1x256xf32>
    %64 = arith.divf %62, %63 : vector<1x256xf32>
    %65 = vector.extract_strided_slice %58 {offsets = [1, 0], sizes = [1, 256], strides = [1, 1]} : vector<2x256xf32> to vector<1x256xf32>
    %cst_36 = arith.constant 0.000000e+00 : f32
    %66 = vector.broadcast %cst_36 : f32 to vector<1x256xf32>
    %67 = arith.maximumf %65, %66 : vector<1x256xf32>
    %68 = vector.broadcast %cst_36 : f32 to vector<1x256xf32>
    %69 = arith.subf %65, %68 : vector<1x256xf32>
    %70 = arith.cmpf one, %69, %69 : vector<1x256xf32>
    %71 = vector.broadcast %cst_36 : f32 to vector<1x256xf32>
    %72 = arith.addf %65, %71 : vector<1x256xf32>
    %73 = math.absf %69 : vector<1x256xf32>
    %cst_37 = arith.constant 0.000000e+00 : f32
    %74 = vector.broadcast %cst_37 : f32 to vector<1x256xf32>
    %75 = arith.subf %74, %73 : vector<1x256xf32>
    %76 = math.exp %75 : vector<1x256xf32>
    %77 = math.log1p %76 : vector<1x256xf32>
    %78 = arith.addf %67, %77 : vector<1x256xf32>
    %79 = arith.select %70, %72, %78 : vector<1x256xi1>, vector<1x256xf32>
    %cst_38 = arith.constant 1.000000e+00 : f32
    %80 = vector.broadcast %cst_38 : f32 to vector<1x256xf32>
    %81 = arith.addf %79, %80 : vector<1x256xf32>
    %82 = tpu.reciprocal %81 {approx = true} : vector<1x256xf32> -> vector<1x256xf32>
    %83 = arith.mulf %79, %82 : vector<1x256xf32>
    %84 = vector.extract_strided_slice %64 {offsets = [0, 0], sizes = [1, 128], strides = [1, 1]} : vector<1x256xf32> to vector<1x128xf32>
    %c0_39 = arith.constant 0 : index
    %c0_40 = arith.constant 0 : index
    %85 = vector.load %arg13[%c0_39, %c0_40] : memref<2x128xf32, #tpu.memory_space<vmem>>, vector<1x128xf32>
    tpu.vector_store %arg13[%c0_39, %c0_40], %84 {strides = array<i32>} : memref<2x128xf32, #tpu.memory_space<vmem>>, vector<1x128xf32>,
    %86 = vector.extract_strided_slice %83 {offsets = [0, 0], sizes = [1, 128], strides = [1, 1]} : vector<1x256xf32> to vector<1x128xf32>
    %c0_41 = arith.constant 0 : index
    %c0_42 = arith.constant 0 : index
    %87 = vector.load %arg14[%c0_41, %c0_42] : memref<2x128xf32, #tpu.memory_space<vmem>>, vector<1x128xf32>
    tpu.vector_store %arg14[%c0_41, %c0_42], %86 {strides = array<i32>} : memref<2x128xf32, #tpu.memory_space<vmem>>, vector<1x128xf32>,
    %88 = vector.extract_strided_slice %64 {offsets = [0, 128], sizes = [1, 128], strides = [1, 1]} : vector<1x256xf32> to vector<1x128xf32>
    %c1 = arith.constant 1 : index
    %c0_43 = arith.constant 0 : index
    %89 = vector.load %arg13[%c1, %c0_43] : memref<2x128xf32, #tpu.memory_space<vmem>>, vector<1x128xf32>
    tpu.vector_store %arg13[%c1, %c0_43], %88 {strides = array<i32>} : memref<2x128xf32, #tpu.memory_space<vmem>>, vector<1x128xf32>,
    %90 = vector.extract_strided_slice %83 {offsets = [0, 128], sizes = [1, 128], strides = [1, 1]} : vector<1x256xf32> to vector<1x128xf32>
    %c1_44 = arith.constant 1 : index
    %c0_45 = arith.constant 0 : index
    %91 = vector.load %arg14[%c1_44, %c0_45] : memref<2x128xf32, #tpu.memory_space<vmem>>, vector<1x128xf32>
    tpu.vector_store %arg14[%c1_44, %c0_45], %90 {strides = array<i32>} : memref<2x128xf32, #tpu.memory_space<vmem>>, vector<1x128xf32>,
    return
  }
  func.func @transform_0(%arg0: i32) -> (i32, i32) {
    %c0_i32 = arith.constant 0 : i32
    %c0_i32_0 = arith.constant 0 : i32
    %c0_i32_1 = arith.constant 0 : i32
    return %c0_i32, %c0_i32_0 : i32, i32
  }
  func.func @transform_1(%arg0: i32) -> (i32, i32) {
    %c0_i32 = arith.constant 0 : i32
    %c0_i32_0 = arith.constant 0 : i32
    %c0_i32_1 = arith.constant 0 : i32
    return %c0_i32, %c0_i32_0 : i32, i32
  }
  func.func @transform_2(%arg0: i32) -> (i32, i32) {
    %c0_i32 = arith.constant 0 : i32
    %c0_i32_0 = arith.constant 0 : i32
    %c0_i32_1 = arith.constant 0 : i32
    return %c0_i32, %c0_i32_0 : i32, i32
  }
  func.func @transform_3(%arg0: i32) -> (i32, i32) {
    %c0_i32 = arith.constant 0 : i32
    %c0_i32_0 = arith.constant 0 : i32
    %c0_i32_1 = arith.constant 0 : i32
    return %c0_i32, %c0_i32_0 : i32, i32
  }
  func.func @transform_4(%arg0: i32) -> (i32, i32) {
    %c0_i32 = arith.constant 0 : i32
    %c0_i32_0 = arith.constant 0 : i32
    %c0_i32_1 = arith.constant 0 : i32
    return %c0_i32, %c0_i32_0 : i32, i32
  }
  func.func @transform_5(%arg0: i32) -> (i32, i32) {
    %c0_i32 = arith.constant 0 : i32
    %c0_i32_0 = arith.constant 0 : i32
    %c0_i32_1 = arith.constant 0 : i32
    return %c0_i32, %c0_i32_0 : i32, i32
  }
  func.func @transform_6(%arg0: i32) -> (i32, i32) {
    %c0_i32 = arith.constant 0 : i32
    %c0_i32_0 = arith.constant 0 : i32
    %c0_i32_1 = arith.constant 0 : i32
    return %c0_i32, %c0_i32_0 : i32, i32
  }
  func.func @transform_7(%arg0: i32) -> (i32, i32) {
    %c0_i32 = arith.constant 0 : i32
    %c0_i32_0 = arith.constant 0 : i32
    %c0_i32_1 = arith.constant 0 : i32
    return %c0_i32, %c0_i32_0 : i32, i32
  }
  func.func @transform_8(%arg0: i32) -> (i32, i32) {
    %c0_i32 = arith.constant 0 : i32
    %c0_i32_0 = arith.constant 0 : i32
    %c0_i32_1 = arith.constant 0 : i32
    return %c0_i32, %c0_i32_0 : i32, i32
  }
  func.func @transform_9(%arg0: i32) -> (i32, i32) {
    %c0_i32 = arith.constant 0 : i32
    %c0_i32_0 = arith.constant 0 : i32
    %c0_i32_1 = arith.constant 0 : i32
    return %c0_i32, %c0_i32_0 : i32, i32
  }
  func.func @transform_10(%arg0: i32) -> (i32, i32) {
    %c0_i32 = arith.constant 0 : i32
    %c0_i32_0 = arith.constant 0 : i32
    %c0_i32_1 = arith.constant 0 : i32
    return %c0_i32, %c0_i32_0 : i32, i32
  }
  func.func @transform_11(%arg0: i32) -> (i32, i32) {
    %c0_i32 = arith.constant 0 : i32
    %c0_i32_0 = arith.constant 0 : i32
    %c0_i32_1 = arith.constant 0 : i32
    return %c0_i32, %c0_i32_0 : i32, i32
  }
  func.func @transform_12(%arg0: i32) -> (i32, i32) {
    %c0_i32 = arith.constant 0 : i32
    %c0_i32_0 = arith.constant 0 : i32
    %c0_i32_1 = arith.constant 0 : i32
    return %c0_i32, %c0_i32_0 : i32, i32
  }
  func.func @transform_13(%arg0: i32) -> (i32, i32) {
    %c0_i32 = arith.constant 0 : i32
    %c0_i32_0 = arith.constant 0 : i32
    %c0_i32_1 = arith.constant 0 : i32
    return %c0_i32, %c0_i32_0 : i32, i32
  }
}

</mosaic_0001>

<llo_original>
// kernel: tpu_custom_call.1
$region0: #{tpu_custom_call.1}
  #allocation0 [shape = 'u32[]', space=smem, size = 0x4, offset = 0x4, fixed_abs, tag = 'smem constant byte address 0x4 - core index']
  #allocation1 [shape = 'u32[144,128]{1,0:T(1,128)}', space=vmem, size = 0x12000, scoped, tag = 'internal scratch']
  %s0 = inlined_call_operand.vmem [shape: f32[3,256], index: 0, kind: input, shape index: {}]
  %s1 = inlined_call_operand.vmem [shape: f32[3,256], index: 1, kind: input, shape index: {}]
  %s2 = inlined_call_operand.vmem [shape: f32[32,3], index: 2, kind: input, shape index: {}]
  %s3 = inlined_call_operand.vmem [shape: f32[32,1], index: 3, kind: input, shape index: {}]
  %s4 = inlined_call_operand.vmem [shape: f32[32,32], index: 4, kind: input, shape index: {}]
  %s5 = inlined_call_operand.vmem [shape: f32[32,1], index: 5, kind: input, shape index: {}]
  %s6 = inlined_call_operand.vmem [shape: f32[64,3], index: 6, kind: input, shape index: {}]
  %s7 = inlined_call_operand.vmem [shape: f32[64,32], index: 7, kind: input, shape index: {}]
  %s8 = inlined_call_operand.vmem [shape: f32[64,64], index: 8, kind: input, shape index: {}]
  %s9 = inlined_call_operand.vmem [shape: f32[64,64], index: 9, kind: input, shape index: {}]
  %s10 = inlined_call_operand.vmem [shape: f32[2,64], index: 10, kind: input, shape index: {}]
  %s11 = inlined_call_operand.vmem [shape: f32[64,4], index: 11, kind: input, shape index: {}]
  %s12 = inlined_call_operand.hbm [shape: f32[2,128], index: 12, kind: output, shape index: {0}]
  %s13 = inlined_call_operand.hbm [shape: f32[2,128], index: 13, kind: output, shape index: {1}]
  %14 = xla_tuple %s12, %s13
  %s15 = sld [smem:[#allocation0]]
  $region66: #{tpu_custom_call.1} parent=0
    _
  %s17 = ssub.s32 1, %s15
  %s18 = scalar_select 0, %s17, %s15
  $region1: #{tpu_custom_call.1} parent=0
    #allocation2 [shape = 'u8[1024]{0}', space=vmem, size = 0x400, scoped, tag = 'output window, operand 0, single buffered']
    #allocation3 [shape = 's32[1]{0}', space=sflag, size = 0x4, scoped, tag = 'scoped memory for tpu_custom_call.1']
    #allocation4 [shape = 'u8[1024]{0}', space=vmem, size = 0x400, scoped, tag = 'output window, operand 1, single buffered']
    #allocation5 [shape = 's32[1]{0}', space=sflag, size = 0x4, scoped, tag = 'scoped memory for tpu_custom_call.1']
    %19 = vsyncpa [#allocation3], 0
    %20 = vsyncpa [#allocation5], 0
    // Predicated region
    $region2: #{tpu_custom_call.1} parent=1 // pred_check
      _
    $region3: #{tpu_custom_call.1} parent=1 // pred_check_branch
      %22 = sbr.rel (0) target = $region5
    $region4: #{tpu_custom_call.1} parent=1 // pred_region
      _
    $region5: #{tpu_custom_call.1} parent=1 // pred_fallthru
      _
    // Predicated region
    $region6: #{tpu_custom_call.1} parent=1 // pred_check
      _
    $region7: #{tpu_custom_call.1} parent=1 // pred_check_branch
      %24 = sbr.rel (0) target = $region9
    $region8: #{tpu_custom_call.1} parent=1 // pred_region
      _
    $region9: #{tpu_custom_call.1} parent=1 // pred_fallthru
      _
    // Predicated region
    $region10: #{tpu_custom_call.1} parent=1 // pred_check
      _
    $region11: #{tpu_custom_call.1} parent=1 // pred_check_branch
      %26 = sbr.rel (0) target = $region13
    $region12: #{tpu_custom_call.1} parent=1 // pred_region
      _
    $region13: #{tpu_custom_call.1} parent=1 // pred_fallthru
      _
    // Predicated region
    $region14: #{tpu_custom_call.1} parent=1 // pred_check
      _
    $region15: #{tpu_custom_call.1} parent=1 // pred_check_branch
      %28 = sbr.rel (0) target = $region17
    $region16: #{tpu_custom_call.1} parent=1 // pred_region
      _
    $region17: #{tpu_custom_call.1} parent=1 // pred_fallthru
      _
    // Predicated region
    $region18: #{tpu_custom_call.1} parent=1 // pred_check
      _
    $region19: #{tpu_custom_call.1} parent=1 // pred_check_branch
      %30 = sbr.rel (0) target = $region21
    $region20: #{tpu_custom_call.1} parent=1 // pred_region
      _
    $region21: #{tpu_custom_call.1} parent=1 // pred_fallthru
      _
    // Predicated region
    $region22: #{tpu_custom_call.1} parent=1 // pred_check
      _
    $region23: #{tpu_custom_call.1} parent=1 // pred_check_branch
      %32 = sbr.rel (0) target = $region25
    $region24: #{tpu_custom_call.1} parent=1 // pred_region
      _
    $region25: #{tpu_custom_call.1} parent=1 // pred_fallthru
      _
    // Predicated region
    $region26: #{tpu_custom_call.1} parent=1 // pred_check
      _
    $region27: #{tpu_custom_call.1} parent=1 // pred_check_branch
      %34 = sbr.rel (0) target = $region29
    $region28: #{tpu_custom_call.1} parent=1 // pred_region
      _
    $region29: #{tpu_custom_call.1} parent=1 // pred_fallthru
      _
    // Predicated region
    $region30: #{tpu_custom_call.1} parent=1 // pred_check
      _
    $region31: #{tpu_custom_call.1} parent=1 // pred_check_branch
      %36 = sbr.rel (0) target = $region33
    $region32: #{tpu_custom_call.1} parent=1 // pred_region
      _
    $region33: #{tpu_custom_call.1} parent=1 // pred_fallthru
      _
    // Predicated region
    $region34: #{tpu_custom_call.1} parent=1 // pred_check
      _
    $region35: #{tpu_custom_call.1} parent=1 // pred_check_branch
      %38 = sbr.rel (0) target = $region37
    $region36: #{tpu_custom_call.1} parent=1 // pred_region
      _
    $region37: #{tpu_custom_call.1} parent=1 // pred_fallthru
      _
    // Predicated region
    $region38: #{tpu_custom_call.1} parent=1 // pred_check
      _
    $region39: #{tpu_custom_call.1} parent=1 // pred_check_branch
      %40 = sbr.rel (0) target = $region41
    $region40: #{tpu_custom_call.1} parent=1 // pred_region
      _
    $region41: #{tpu_custom_call.1} parent=1 // pred_fallthru
      _
    // Predicated region
    $region42: #{tpu_custom_call.1} parent=1 // pred_check
      _
    $region43: #{tpu_custom_call.1} parent=1 // pred_check_branch
      %42 = sbr.rel (0) target = $region45
    $region44: #{tpu_custom_call.1} parent=1 // pred_region
      _
    $region45: #{tpu_custom_call.1} parent=1 // pred_fallthru
      _
    // Predicated region
    $region46: #{tpu_custom_call.1} parent=1 // pred_check
      _
    $region47: #{tpu_custom_call.1} parent=1 // pred_check_branch
      %44 = sbr.rel (0) target = $region49
    $region48: #{tpu_custom_call.1} parent=1 // pred_region
      _
    $region49: #{tpu_custom_call.1} parent=1 // pred_fallthru
      _
    %v45 = vld [vmem:[%s2] sm:$0xff]
    %v46 = vld [vmem:[%s2 + $0x8] sm:$0xff]
    %v47 = vld [vmem:[%s2 + $0x10] sm:$0xff]
    %v48 = vld [vmem:[%s2 + $0x18] sm:$0xff]
    %v49 = vld [vmem:[%s0] sm:$0x77]
    %v50 = vld [vmem:[%s3] sm:$0xff]
    %v51 = vld [vmem:[%s3 + $0x8] sm:$0xff]
    %v52 = vld [vmem:[%s3 + $0x10] sm:$0xff]
    %v53 = vld [vmem:[%s3 + $0x18] sm:$0xff]
    %55 = vset.pattern.permute.xlu0 0
    %56 = vperm.xlu0 %55, %v50
    %v57 = vpop.permute.xlu0 %56
    %60 = vset.pattern.permute.xlu0 0
    %61 = vperm.xlu0 %60, %v51
    %v62 = vpop.permute.xlu0 %61
    %65 = vset.pattern.permute.xlu0 0
    %66 = vperm.xlu0 %65, %v52
    %v67 = vpop.permute.xlu0 %66
    %70 = vset.pattern.permute.xlu0 0
    %71 = vperm.xlu0 %70, %v53
    %v72 = vpop.permute.xlu0 %71
    %v75 = vcombine.high %v49, %v49
    %vm76 = vcmask 23552
    %v78 = vsel %vm76, %v45, 0
    %v81 = vsel %vm76, %v46, 0
    %v84 = vsel %vm76, %v47, 0
    %v87 = vsel %vm76, %v48, 0
    %vm89 = vcmask 1042432
    %v90 = vsel %vm89, %v49, 0
    %v92 = vsel %vm89, %v75, 0
    %94 = vmatprep.subr.mxu0 %v92
    %95 = vmatpush1.msra.mxu0 %v90
    %96 = vmatprep.subr.mxu0 0.0
    %97 = vmatpush1.msra.mxu0 0.0
    %98 = vmatprep.subr.mxu0 0.0
    %99 = vmatpush1.msra.mxu0 0.0
    %100 = vmatprep.subr.mxu0 0.0
    %101 = vmatpush1.msra.mxu0 0.0
    %102 = vmatprep.subr.mxu0 0.0
    %103 = vmatpush1.msra.mxu0 0.0
    %104 = vmatprep.subr.mxu0 0.0
    %105 = vmatpush1.msra.mxu0 0.0
    %106 = vmatprep.subr.mxu0 0.0
    %107 = vmatpush1.msra.mxu0 0.0
    %108 = vmatprep.subr.mxu0 0.0
    %109 = vmatpush1.msra.mxu0 0.0
    %110 = vmatprep.subr.mxu0 0.0
    %111 = vmatpush1.msra.mxu0 0.0
    %112 = vmatprep.subr.mxu0 0.0
    %113 = vmatpush1.msra.mxu0 0.0
    %114 = vmatprep.subr.mxu0 0.0
    %115 = vmatpush1.msra.mxu0 0.0
    %116 = vmatprep.subr.mxu0 0.0
    %117 = vmatpush1.msra.mxu0 0.0
    %118 = vmatprep.subr.mxu0 0.0
    %119 = vmatpush1.msra.mxu0 0.0
    %120 = vmatprep.subr.mxu0 0.0
    %121 = vmatpush1.msra.mxu0 0.0
    %122 = vmatprep.subr.mxu0 0.0
    %123 = vmatpush1.msra.mxu0 0.0
    %124 = vmatprep.subr.mxu0 0.0
    %125 = vmatpush1.msra.mxu0 0.0
    %126 = vmatprep.subr.mxu0 0.0
    %127 = vmatpush1.msra.mxu0 0.0
    %128 = vmatprep.subr.mxu0 0.0
    %129 = vmatpush1.msra.mxu0 0.0
    %130 = vmatprep.subr.mxu0 0.0
    %131 = vmatpush1.msra.mxu0 0.0
    %132 = vmatprep.subr.mxu0 0.0
    %133 = vmatpush1.msra.mxu0 0.0
    %134 = vmatprep.subr.mxu0 0.0
    %135 = vmatpush1.msra.mxu0 0.0
    %136 = vmatprep.subr.mxu0 0.0
    %137 = vmatpush1.msra.mxu0 0.0
    %138 = vmatprep.subr.mxu0 0.0
    %139 = vmatpush1.msra.mxu0 0.0
    %140 = vmatprep.subr.mxu0 0.0
    %141 = vmatpush1.msra.mxu0 0.0
    %142 = vmatprep.subr.mxu0 0.0
    %143 = vmatpush1.msra.mxu0 0.0
    %144 = vmatprep.subr.mxu0 0.0
    %145 = vmatpush1.msra.mxu0 0.0
    %146 = vmatprep.subr.mxu0 0.0
    %147 = vmatpush1.msra.mxu0 0.0
    %148 = vmatprep.subr.mxu0 0.0
    %149 = vmatpush1.msra.mxu0 0.0
    %150 = vmatprep.subr.mxu0 0.0
    %151 = vmatpush1.msra.mxu0 0.0
    %152 = vmatprep.subr.mxu0 0.0
    %153 = vmatpush1.msra.mxu0 0.0
    %154 = vmatprep.subr.mxu0 0.0
    %155 = vmatpush1.msra.mxu0 0.0
    %156 = vmatprep.subr.mxu0 0.0
    %157 = vmatpush1.msra.mxu0 0.0
    %158 = vmatprep.mubr.f32.mxu0 0.0
    %159 = vmatmul.mubr.f32.gmra.mrb[0].mxu0 %v78
    %v160 = vpop.f32.mrb[0].mxu0
    %v161 = vadd.f32 %v57, %v160
    %v162 = vpop.f32.mrb[0].mxu0
    %v163 = vadd.f32 %v57, %v162
    %164 = vmatprep.mubr.f32.mxu0 0.0
    %165 = vmatmul.mubr.f32.gmra.mrb[0].mxu0 %v81
    %v166 = vpop.f32.mrb[0].mxu0
    %v167 = vadd.f32 %v62, %v166
    %v168 = vpop.f32.mrb[0].mxu0
    %v169 = vadd.f32 %v62, %v168
    %170 = vmatprep.mubr.f32.mxu0 0.0
    %171 = vmatmul.mubr.f32.gmra.mrb[0].mxu0 %v84
    %v172 = vpop.f32.mrb[0].mxu0
    %v173 = vadd.f32 %v67, %v172
    %v174 = vpop.f32.mrb[0].mxu0
    %v175 = vadd.f32 %v67, %v174
    %176 = vmatprep.mubr.f32.mxu0 0.0
    %177 = vmatmul.mubr.f32.gmra.mrb[0].mxu0 %v87
    %v178 = vpop.f32.mrb[0].mxu0
    %v179 = vadd.f32 %v72, %v178
    %v180 = vpop.f32.mrb[0].mxu0
    %v181 = vadd.f32 %v72, %v180
    %182 = vdwg.mxu0
    %v183 = vmax.f32 %v161, 0.0
    %v184 = vmax.f32 %v163, 0.0
    %v185 = vmax.f32 %v167, 0.0
    %v186 = vmax.f32 %v169, 0.0
    %v187 = vmax.f32 %v173, 0.0
    %v188 = vmax.f32 %v175, 0.0
    %v189 = vmax.f32 %v179, 0.0
    %v190 = vmax.f32 %v181, 0.0
    %v191 = vld [vmem:[%s4] sm:$0xff]
    %v192 = vld [vmem:[%s4 + $0x8] sm:$0xff]
    %v193 = vld [vmem:[%s4 + $0x10] sm:$0xff]
    %v194 = vld [vmem:[%s4 + $0x18] sm:$0xff]
    %v195 = vld [vmem:[%s5] sm:$0xff]
    %v196 = vld [vmem:[%s5 + $0x8] sm:$0xff]
    %v197 = vld [vmem:[%s5 + $0x10] sm:$0xff]
    %v198 = vld [vmem:[%s5 + $0x18] sm:$0xff]
    %200 = vset.pattern.permute.xlu0 0
    %201 = vperm.xlu0 %200, %v195
    %v202 = vpop.permute.xlu0 %201
    %205 = vset.pattern.permute.xlu0 0
    %206 = vperm.xlu0 %205, %v196
    %v207 = vpop.permute.xlu0 %206
    %210 = vset.pattern.permute.xlu0 0
    %211 = vperm.xlu0 %210, %v197
    %v212 = vpop.permute.xlu0 %211
    %215 = vset.pattern.permute.xlu0 0
    %216 = vperm.xlu0 %215, %v198
    %v217 = vpop.permute.xlu0 %216
    %vm219 = vcmask 261120
    %v221 = vsel %vm219, %v191, 0
    %v224 = vsel %vm219, %v192, 0
    %v227 = vsel %vm219, %v193, 0
    %v230 = vsel %vm219, %v194, 0
    %232 = vmatprep.subr.mxu0 %v184
    %233 = vmatpush1.msra.mxu0 %v183
    %234 = vmatprep.subr.mxu0 %v186
    %235 = vmatpush1.msra.mxu0 %v185
    %236 = vmatprep.subr.mxu0 %v188
    %237 = vmatpush1.msra.mxu0 %v187
    %238 = vmatprep.subr.mxu0 %v190
    %239 = vmatpush1.msra.mxu0 %v189
    %240 = vmatprep.subr.mxu0 0.0
    %241 = vmatpush1.msra.mxu0 0.0
    %242 = vmatprep.subr.mxu0 0.0
    %243 = vmatpush1.msra.mxu0 0.0
    %244 = vmatprep.subr.mxu0 0.0
    %245 = vmatpush1.msra.mxu0 0.0
    %246 = vmatprep.subr.mxu0 0.0
    %247 = vmatpush1.msra.mxu0 0.0
    %248 = vmatprep.subr.mxu0 0.0
    %249 = vmatpush1.msra.mxu0 0.0
    %250 = vmatprep.subr.mxu0 0.0
    %251 = vmatpush1.msra.mxu0 0.0
    %252 = vmatprep.subr.mxu0 0.0
    %253 = vmatpush1.msra.mxu0 0.0
    %254 = vmatprep.subr.mxu0 0.0
    %255 = vmatpush1.msra.mxu0 0.0
    %256 = vmatprep.subr.mxu0 0.0
    %257 = vmatpush1.msra.mxu0 0.0
    %258 = vmatprep.subr.mxu0 0.0
    %259 = vmatpush1.msra.mxu0 0.0
    %260 = vmatprep.subr.mxu0 0.0
    %261 = vmatpush1.msra.mxu0 0.0
    %262 = vmatprep.subr.mxu0 0.0
    %263 = vmatpush1.msra.mxu0 0.0
    %264 = vmatprep.subr.mxu0 0.0
    %265 = vmatpush1.msra.mxu0 0.0
    %266 = vmatprep.subr.mxu0 0.0
    %267 = vmatpush1.msra.mxu0 0.0
    %268 = vmatprep.subr.mxu0 0.0
    %269 = vmatpush1.msra.mxu0 0.0
    %270 = vmatprep.subr.mxu0 0.0
    %271 = vmatpush1.msra.mxu0 0.0
    %272 = vmatprep.subr.mxu0 0.0
    %273 = vmatpush1.msra.mxu0 0.0
    %274 = vmatprep.subr.mxu0 0.0
    %275 = vmatpush1.msra.mxu0 0.0
    %276 = vmatprep.subr.mxu0 0.0
    %277 = vmatpush1.msra.mxu0 0.0
    %278 = vmatprep.subr.mxu0 0.0
    %279 = vmatpush1.msra.mxu0 0.0
    %280 = vmatprep.subr.mxu0 0.0
    %281 = vmatpush1.msra.mxu0 0.0
    %282 = vmatprep.subr.mxu0 0.0
    %283 = vmatpush1.msra.mxu0 0.0
    %284 = vmatprep.subr.mxu0 0.0
    %285 = vmatpush1.msra.mxu0 0.0
    %286 = vmatprep.subr.mxu0 0.0
    %287 = vmatpush1.msra.mxu0 0.0
    %288 = vmatprep.subr.mxu0 0.0
    %289 = vmatpush1.msra.mxu0 0.0
    %290 = vmatprep.subr.mxu0 0.0
    %291 = vmatpush1.msra.mxu0 0.0
    %292 = vmatprep.subr.mxu0 0.0
    %293 = vmatpush1.msra.mxu0 0.0
    %294 = vmatprep.subr.mxu0 0.0
    %295 = vmatpush1.msra.mxu0 0.0
    %296 = vmatprep.mubr.f32.mxu0 0.0
    %297 = vmatmul.mubr.f32.gmra.mrb[0].mxu0 %v221
    %v298 = vpop.f32.mrb[0].mxu0
    %v299 = vadd.f32 %v202, %v298
    %v300 = vpop.f32.mrb[0].mxu0
    %v301 = vadd.f32 %v202, %v300
    %302 = vmatprep.mubr.f32.mxu0 0.0
    %303 = vmatmul.mubr.f32.gmra.mrb[0].mxu0 %v224
    %v304 = vpop.f32.mrb[0].mxu0
    %v305 = vadd.f32 %v207, %v304
    %v306 = vpop.f32.mrb[0].mxu0
    %v307 = vadd.f32 %v207, %v306
    %308 = vmatprep.mubr.f32.mxu0 0.0
    %309 = vmatmul.mubr.f32.gmra.mrb[0].mxu0 %v227
    %v310 = vpop.f32.mrb[0].mxu0
    %v311 = vadd.f32 %v212, %v310
    %v312 = vpop.f32.mrb[0].mxu0
    %v313 = vadd.f32 %v212, %v312
    %314 = vmatprep.mubr.f32.mxu0 0.0
    %315 = vmatmul.mubr.f32.gmra.mrb[0].mxu0 %v230
    %v316 = vpop.f32.mrb[0].mxu0
    %v317 = vadd.f32 %v217, %v316
    %v318 = vpop.f32.mrb[0].mxu0
    %v319 = vadd.f32 %v217, %v318
    %320 = vdwg.mxu0
    %321 = vmax.xlane.f32.xlu0 %v299
    %v322 = vpop.xlane.xlu0 %321
    %323 = vmax.xlane.f32.xlu0 %v305
    %v324 = vpop.xlane.xlu0 %323
    %325 = vmax.xlane.f32.xlu0 %v311
    %v326 = vpop.xlane.xlu0 %325
    %327 = vmax.xlane.f32.xlu0 %v317
    %v328 = vpop.xlane.xlu0 %327
    %329 = vmax.xlane.f32.xlu0 %v301
    %v330 = vpop.xlane.xlu0 %329
    %331 = vmax.xlane.f32.xlu0 %v307
    %v332 = vpop.xlane.xlu0 %331
    %333 = vmax.xlane.f32.xlu0 %v313
    %v334 = vpop.xlane.xlu0 %333
    %335 = vmax.xlane.f32.xlu0 %v319
    %v336 = vpop.xlane.xlu0 %335
    %vm337 = vcmask 7168
    %v338 = vsel %vm337, %v322, %v330
    %v339 = vsel %vm337, %v324, %v332
    %v340 = vsel %vm337, %v326, %v334
    %v341 = vsel %vm337, %v328, %v336
    %v342 = vld [vmem:[%s7] sm:$0xff]
    %v343 = vld [vmem:[%s7 + $0x8] sm:$0xff]
    %v344 = vld [vmem:[%s7 + $0x10] sm:$0xff]
    %v345 = vld [vmem:[%s7 + $0x18] sm:$0xff]
    %v346 = vld [vmem:[%s7 + $0x20] sm:$0xff]
    %v347 = vld [vmem:[%s7 + $0x28] sm:$0xff]
    %v348 = vld [vmem:[%s7 + $0x30] sm:$0xff]
    %v349 = vld [vmem:[%s7 + $0x38] sm:$0xff]
    %v351 = vsel %vm219, %v342, 0
    %v354 = vsel %vm219, %v343, 0
    %v357 = vsel %vm219, %v344, 0
    %v360 = vsel %vm219, %v345, 0
    %v363 = vsel %vm219, %v346, 0
    %v366 = vsel %vm219, %v347, 0
    %v369 = vsel %vm219, %v348, 0
    %v372 = vsel %vm219, %v349, 0
    %374 = vmatprep.subr.mxu0 0.0
    %375 = vmatpush1.msra.mxu0 %v338
    %376 = vmatprep.subr.mxu0 0.0
    %377 = vmatpush1.msra.mxu0 %v339
    %378 = vmatprep.subr.mxu0 0.0
    %379 = vmatpush1.msra.mxu0 %v340
    %380 = vmatprep.subr.mxu0 0.0
    %381 = vmatpush1.msra.mxu0 %v341
    %382 = vmatprep.subr.mxu0 0.0
    %383 = vmatpush1.msra.mxu0 0.0
    %384 = vmatprep.subr.mxu0 0.0
    %385 = vmatpush1.msra.mxu0 0.0
    %386 = vmatprep.subr.mxu0 0.0
    %387 = vmatpush1.msra.mxu0 0.0
    %388 = vmatprep.subr.mxu0 0.0
    %389 = vmatpush1.msra.mxu0 0.0
    %390 = vmatprep.subr.mxu0 0.0
    %391 = vmatpush1.msra.mxu0 0.0
    %392 = vmatprep.subr.mxu0 0.0
    %393 = vmatpush1.msra.mxu0 0.0
    %394 = vmatprep.subr.mxu0 0.0
    %395 = vmatpush1.msra.mxu0 0.0
    %396 = vmatprep.subr.mxu0 0.0
    %397 = vmatpush1.msra.mxu0 0.0
    %398 = vmatprep.subr.mxu0 0.0
    %399 = vmatpush1.msra.mxu0 0.0
    %400 = vmatprep.subr.mxu0 0.0
    %401 = vmatpush1.msra.mxu0 0.0
    %402 = vmatprep.subr.mxu0 0.0
    %403 = vmatpush1.msra.mxu0 0.0
    %404 = vmatprep.subr.mxu0 0.0
    %405 = vmatpush1.msra.mxu0 0.0
    %406 = vmatprep.subr.mxu0 0.0
    %407 = vmatpush1.msra.mxu0 0.0
    %408 = vmatprep.subr.mxu0 0.0
    %409 = vmatpush1.msra.mxu0 0.0
    %410 = vmatprep.subr.mxu0 0.0
    %411 = vmatpush1.msra.mxu0 0.0
    %412 = vmatprep.subr.mxu0 0.0
    %413 = vmatpush1.msra.mxu0 0.0
    %414 = vmatprep.subr.mxu0 0.0
    %415 = vmatpush1.msra.mxu0 0.0
    %416 = vmatprep.subr.mxu0 0.0
    %417 = vmatpush1.msra.mxu0 0.0
    %418 = vmatprep.subr.mxu0 0.0
    %419 = vmatpush1.msra.mxu0 0.0
    %420 = vmatprep.subr.mxu0 0.0
    %421 = vmatpush1.msra.mxu0 0.0
    %422 = vmatprep.subr.mxu0 0.0
    %423 = vmatpush1.msra.mxu0 0.0
    %424 = vmatprep.subr.mxu0 0.0
    %425 = vmatpush1.msra.mxu0 0.0
    %426 = vmatprep.subr.mxu0 0.0
    %427 = vmatpush1.msra.mxu0 0.0
    %428 = vmatprep.subr.mxu0 0.0
    %429 = vmatpush1.msra.mxu0 0.0
    %430 = vmatprep.subr.mxu0 0.0
    %431 = vmatpush1.msra.mxu0 0.0
    %432 = vmatprep.subr.mxu0 0.0
    %433 = vmatpush1.msra.mxu0 0.0
    %434 = vmatprep.subr.mxu0 0.0
    %435 = vmatpush1.msra.mxu0 0.0
    %436 = vmatprep.subr.mxu0 0.0
    %437 = vmatpush1.msra.mxu0 0.0
    %438 = vmatprep.mubr.f32.mxu0 0.0
    %439 = vmatmul.mubr.f32.gmra.mrb[0].mxu0 %v351
    %v440 = vpop.f32.mrb[0].mxu0
    %v441 = vadd.f32 0.0, %v440
    %v442 = vpop.f32.mrb[0].mxu0
    %443 = vmatprep.mubr.f32.mxu0 0.0
    %444 = vmatmul.mubr.f32.gmra.mrb[0].mxu0 %v354
    %v445 = vpop.f32.mrb[0].mxu0
    %v446 = vadd.f32 0.0, %v445
    %v447 = vpop.f32.mrb[0].mxu0
    %448 = vmatprep.mubr.f32.mxu0 0.0
    %449 = vmatmul.mubr.f32.gmra.mrb[0].mxu0 %v357
    %v450 = vpop.f32.mrb[0].mxu0
    %v451 = vadd.f32 0.0, %v450
    %v452 = vpop.f32.mrb[0].mxu0
    %453 = vmatprep.mubr.f32.mxu0 0.0
    %454 = vmatmul.mubr.f32.gmra.mrb[0].mxu0 %v360
    %v455 = vpop.f32.mrb[0].mxu0
    %v456 = vadd.f32 0.0, %v455
    %v457 = vpop.f32.mrb[0].mxu0
    %458 = vmatprep.mubr.f32.mxu0 0.0
    %459 = vmatmul.mubr.f32.gmra.mrb[0].mxu0 %v363
    %v460 = vpop.f32.mrb[0].mxu0
    %v461 = vadd.f32 0.0, %v460
    %v462 = vpop.f32.mrb[0].mxu0
    %463 = vmatprep.mubr.f32.mxu0 0.0
    %464 = vmatmul.mubr.f32.gmra.mrb[0].mxu0 %v366
    %v465 = vpop.f32.mrb[0].mxu0
    %v466 = vadd.f32 0.0, %v465
    %v467 = vpop.f32.mrb[0].mxu0
    %468 = vmatprep.mubr.f32.mxu0 0.0
    %469 = vmatmul.mubr.f32.gmra.mrb[0].mxu0 %v369
    %v470 = vpop.f32.mrb[0].mxu0
    %v471 = vadd.f32 0.0, %v470
    %v472 = vpop.f32.mrb[0].mxu0
    %473 = vmatprep.mubr.f32.mxu0 0.0
    %474 = vmatmul.mubr.f32.gmra.mrb[0].mxu0 %v372
    %v475 = vpop.f32.mrb[0].mxu0
    %v476 = vadd.f32 0.0, %v475
    %v477 = vpop.f32.mrb[0].mxu0
    %478 = vdwg.mxu0
    %480 = vset.pattern.permute.xlu0 0
    %481 = vperm.xlu0 %480, %v441
    %v482 = vpop.permute.xlu0 %481
    %485 = vset.pattern.permute.xlu0 0
    %486 = vperm.xlu0 %485, %v446
    %v487 = vpop.permute.xlu0 %486
    %490 = vset.pattern.permute.xlu0 0
    %491 = vperm.xlu0 %490, %v451
    %v492 = vpop.permute.xlu0 %491
    %495 = vset.pattern.permute.xlu0 0
    %496 = vperm.xlu0 %495, %v456
    %v497 = vpop.permute.xlu0 %496
    %500 = vset.pattern.permute.xlu0 0
    %501 = vperm.xlu0 %500, %v461
    %v502 = vpop.permute.xlu0 %501
    %505 = vset.pattern.permute.xlu0 0
    %506 = vperm.xlu0 %505, %v466
    %v507 = vpop.permute.xlu0 %506
    %510 = vset.pattern.permute.xlu0 0
    %511 = vperm.xlu0 %510, %v471
    %v512 = vpop.permute.xlu0 %511
    %515 = vset.pattern.permute.xlu0 0
    %516 = vperm.xlu0 %515, %v476
    %v517 = vpop.permute.xlu0 %516
    %519 = vset.pattern.permute.xlu0 1
    %520 = vperm.xlu0 %519, %v441
    %v521 = vpop.permute.xlu0 %520
    %523 = vset.pattern.permute.xlu0 1
    %524 = vperm.xlu0 %523, %v446
    %v525 = vpop.permute.xlu0 %524
    %527 = vset.pattern.permute.xlu0 1
    %528 = vperm.xlu0 %527, %v451
    %v529 = vpop.permute.xlu0 %528
    %531 = vset.pattern.permute.xlu0 1
    %532 = vperm.xlu0 %531, %v456
    %v533 = vpop.permute.xlu0 %532
    %535 = vset.pattern.permute.xlu0 1
    %536 = vperm.xlu0 %535, %v461
    %v537 = vpop.permute.xlu0 %536
    %539 = vset.pattern.permute.xlu0 1
    %540 = vperm.xlu0 %539, %v466
    %v541 = vpop.permute.xlu0 %540
    %543 = vset.pattern.permute.xlu0 1
    %544 = vperm.xlu0 %543, %v471
    %v545 = vpop.permute.xlu0 %544
    %547 = vset.pattern.permute.xlu0 1
    %548 = vperm.xlu0 %547, %v476
    %v549 = vpop.permute.xlu0 %548
    %v551 = vld [vmem:[%s11] sm:$0xff]
    %v552 = vld [vmem:[%s11 + $0x8] sm:$0xff]
    %v553 = vld [vmem:[%s11 + $0x10] sm:$0xff]
    %v554 = vld [vmem:[%s11 + $0x18] sm:$0xff]
    %v555 = vld [vmem:[%s11 + $0x20] sm:$0xff]
    %v556 = vld [vmem:[%s11 + $0x28] sm:$0xff]
    %v557 = vld [vmem:[%s11 + $0x30] sm:$0xff]
    %v558 = vld [vmem:[%s11 + $0x38] sm:$0xff]
    %v559 = vld [vmem:[%s6] sm:$0xff]
    %v560 = vld [vmem:[%s6 + $0x8] sm:$0xff]
    %v561 = vld [vmem:[%s6 + $0x10] sm:$0xff]
    %v562 = vld [vmem:[%s6 + $0x18] sm:$0xff]
    %v563 = vld [vmem:[%s6 + $0x20] sm:$0xff]
    %v564 = vld [vmem:[%s6 + $0x28] sm:$0xff]
    %v565 = vld [vmem:[%s6 + $0x30] sm:$0xff]
    %v566 = vld [vmem:[%s6 + $0x38] sm:$0xff]
    %v567 = vld [vmem:[%s1] sm:$0x77]
    %v569 = vcombine.high %v567, %v567
    %v571 = vsel %vm76, %v559, 0
    %v574 = vsel %vm76, %v560, 0
    %v577 = vsel %vm76, %v561, 0
    %v580 = vsel %vm76, %v562, 0
    %v583 = vsel %vm76, %v563, 0
    %v586 = vsel %vm76, %v564, 0
    %v589 = vsel %vm76, %v565, 0
    %v592 = vsel %vm76, %v566, 0
    %v594 = vsel %vm89, %v567, 0
    %v596 = vsel %vm89, %v569, 0
    %598 = vmatprep.subr.mxu0 %v596
    %599 = vmatpush1.msra.mxu0 %v594
    %600 = vmatprep.subr.mxu0 0.0
    %601 = vmatpush1.msra.mxu0 0.0
    %602 = vmatprep.subr.mxu0 0.0
    %603 = vmatpush1.msra.mxu0 0.0
    %604 = vmatprep.subr.mxu0 0.0
    %605 = vmatpush1.msra.mxu0 0.0
    %606 = vmatprep.subr.mxu0 0.0
    %607 = vmatpush1.msra.mxu0 0.0
    %608 = vmatprep.subr.mxu0 0.0
    %609 = vmatpush1.msra.mxu0 0.0
    %610 = vmatprep.subr.mxu0 0.0
    %611 = vmatpush1.msra.mxu0 0.0
    %612 = vmatprep.subr.mxu0 0.0
    %613 = vmatpush1.msra.mxu0 0.0
    %614 = vmatprep.subr.mxu0 0.0
    %615 = vmatpush1.msra.mxu0 0.0
    %616 = vmatprep.subr.mxu0 0.0
    %617 = vmatpush1.msra.mxu0 0.0
    %618 = vmatprep.subr.mxu0 0.0
    %619 = vmatpush1.msra.mxu0 0.0
    %620 = vmatprep.subr.mxu0 0.0
    %621 = vmatpush1.msra.mxu0 0.0
    %622 = vmatprep.subr.mxu0 0.0
    %623 = vmatpush1.msra.mxu0 0.0
    %624 = vmatprep.subr.mxu0 0.0
    %625 = vmatpush1.msra.mxu0 0.0
    %626 = vmatprep.subr.mxu0 0.0
    %627 = vmatpush1.msra.mxu0 0.0
    %628 = vmatprep.subr.mxu0 0.0
    %629 = vmatpush1.msra.mxu0 0.0
    %630 = vmatprep.subr.mxu0 0.0
    %631 = vmatpush1.msra.mxu0 0.0
    %632 = vmatprep.subr.mxu0 0.0
    %633 = vmatpush1.msra.mxu0 0.0
    %634 = vmatprep.subr.mxu0 0.0
    %635 = vmatpush1.msra.mxu0 0.0
    %636 = vmatprep.subr.mxu0 0.0
    %637 = vmatpush1.msra.mxu0 0.0
    %638 = vmatprep.subr.mxu0 0.0
    %639 = vmatpush1.msra.mxu0 0.0
    %640 = vmatprep.subr.mxu0 0.0
    %641 = vmatpush1.msra.mxu0 0.0
    %642 = vmatprep.subr.mxu0 0.0
    %643 = vmatpush1.msra.mxu0 0.0
    %644 = vmatprep.subr.mxu0 0.0
    %645 = vmatpush1.msra.mxu0 0.0
    %646 = vmatprep.subr.mxu0 0.0
    %647 = vmatpush1.msra.mxu0 0.0
    %648 = vmatprep.subr.mxu0 0.0
    %649 = vmatpush1.msra.mxu0 0.0
    %650 = vmatprep.subr.mxu0 0.0
    %651 = vmatpush1.msra.mxu0 0.0
    %652 = vmatprep.subr.mxu0 0.0
    %653 = vmatpush1.msra.mxu0 0.0
    %654 = vmatprep.subr.mxu0 0.0
    %655 = vmatpush1.msra.mxu0 0.0
    %656 = vmatprep.subr.mxu0 0.0
    %657 = vmatpush1.msra.mxu0 0.0
    %658 = vmatprep.subr.mxu0 0.0
    %659 = vmatpush1.msra.mxu0 0.0
    %660 = vmatprep.subr.mxu0 0.0
    %661 = vmatpush1.msra.mxu0 0.0
    %662 = vmatprep.mubr.f32.mxu0 0.0
    %663 = vmatmul.mubr.f32.gmra.mrb[0].mxu0 %v571
    %v664 = vpop.f32.mrb[0].mxu0
    %v665 = vadd.f32 %v482, %v664
    %v666 = vpop.f32.mrb[0].mxu0
    %v667 = vadd.f32 %v521, %v666
    %668 = vmatprep.mubr.f32.mxu0 0.0
    %669 = vmatmul.mubr.f32.gmra.mrb[0].mxu0 %v574
    %v670 = vpop.f32.mrb[0].mxu0
    %v671 = vadd.f32 %v487, %v670
    %v672 = vpop.f32.mrb[0].mxu0
    %v673 = vadd.f32 %v525, %v672
    %674 = vmatprep.mubr.f32.mxu0 0.0
    %675 = vmatmul.mubr.f32.gmra.mrb[0].mxu0 %v577
    %v676 = vpop.f32.mrb[0].mxu0
    %v677 = vadd.f32 %v492, %v676
    %v678 = vpop.f32.mrb[0].mxu0
    %v679 = vadd.f32 %v529, %v678
    %680 = vmatprep.mubr.f32.mxu0 0.0
    %681 = vmatmul.mubr.f32.gmra.mrb[0].mxu0 %v580
    %v682 = vpop.f32.mrb[0].mxu0
    %v683 = vadd.f32 %v497, %v682
    %v684 = vpop.f32.mrb[0].mxu0
    %v685 = vadd.f32 %v533, %v684
    %686 = vmatprep.mubr.f32.mxu0 0.0
    %687 = vmatmul.mubr.f32.gmra.mrb[0].mxu0 %v583
    %v688 = vpop.f32.mrb[0].mxu0
    %v689 = vadd.f32 %v502, %v688
    %v690 = vpop.f32.mrb[0].mxu0
    %v691 = vadd.f32 %v537, %v690
    %692 = vmatprep.mubr.f32.mxu0 0.0
    %693 = vmatmul.mubr.f32.gmra.mrb[0].mxu0 %v586
    %v694 = vpop.f32.mrb[0].mxu0
    %v695 = vadd.f32 %v507, %v694
    %v696 = vpop.f32.mrb[0].mxu0
    %v697 = vadd.f32 %v541, %v696
    %698 = vmatprep.mubr.f32.mxu0 0.0
    %699 = vmatmul.mubr.f32.gmra.mrb[0].mxu0 %v589
    %v700 = vpop.f32.mrb[0].mxu0
    %v701 = vadd.f32 %v512, %v700
    %v702 = vpop.f32.mrb[0].mxu0
    %v703 = vadd.f32 %v545, %v702
    %704 = vmatprep.mubr.f32.mxu0 0.0
    %705 = vmatmul.mubr.f32.gmra.mrb[0].mxu0 %v592
    %v706 = vpop.f32.mrb[0].mxu0
    %v707 = vadd.f32 %v517, %v706
    %v708 = vpop.f32.mrb[0].mxu0
    %v709 = vadd.f32 %v549, %v708
    %710 = vdwg.mxu0
    %712 = vset.pattern.permute.xlu0 0
    %713 = vperm.xlu0 %712, %v551
    %v714 = vpop.permute.xlu0 %713
    %717 = vset.pattern.permute.xlu0 0
    %718 = vperm.xlu0 %717, %v552
    %v719 = vpop.permute.xlu0 %718
    %722 = vset.pattern.permute.xlu0 0
    %723 = vperm.xlu0 %722, %v553
    %v724 = vpop.permute.xlu0 %723
    %727 = vset.pattern.permute.xlu0 0
    %728 = vperm.xlu0 %727, %v554
    %v729 = vpop.permute.xlu0 %728
    %732 = vset.pattern.permute.xlu0 0
    %733 = vperm.xlu0 %732, %v555
    %v734 = vpop.permute.xlu0 %733
    %737 = vset.pattern.permute.xlu0 0
    %738 = vperm.xlu0 %737, %v556
    %v739 = vpop.permute.xlu0 %738
    %742 = vset.pattern.permute.xlu0 0
    %743 = vperm.xlu0 %742, %v557
    %v744 = vpop.permute.xlu0 %743
    %747 = vset.pattern.permute.xlu0 0
    %748 = vperm.xlu0 %747, %v558
    %v749 = vpop.permute.xlu0 %748
    %v751 = vadd.f32 %v665, %v714
    %v752 = vadd.f32 %v667, %v714
    %v753 = vadd.f32 %v671, %v719
    %v754 = vadd.f32 %v673, %v719
    %v755 = vadd.f32 %v677, %v724
    %v756 = vadd.f32 %v679, %v724
    %v757 = vadd.f32 %v683, %v729
    %v758 = vadd.f32 %v685, %v729
    %v759 = vadd.f32 %v689, %v734
    %v760 = vadd.f32 %v691, %v734
    %v761 = vadd.f32 %v695, %v739
    %v762 = vadd.f32 %v697, %v739
    %v763 = vadd.f32 %v701, %v744
    %v764 = vadd.f32 %v703, %v744
    %v765 = vadd.f32 %v707, %v749
    %v766 = vadd.f32 %v709, %v749
    %v767 = vld [vmem:[%s8] sm:$0xff]
    %v768 = vld [vmem:[%s8 + $0x8] sm:$0xff]
    %v769 = vld [vmem:[%s8 + $0x10] sm:$0xff]
    %v770 = vld [vmem:[%s8 + $0x18] sm:$0xff]
    %v771 = vld [vmem:[%s8 + $0x20] sm:$0xff]
    %v772 = vld [vmem:[%s8 + $0x28] sm:$0xff]
    %v773 = vld [vmem:[%s8 + $0x30] sm:$0xff]
    %v774 = vld [vmem:[%s8 + $0x38] sm:$0xff]
    %v775 = vmax.f32 %v751, 0.0
    %v776 = vmax.f32 %v752, 0.0
    %v777 = vmax.f32 %v753, 0.0
    %v778 = vmax.f32 %v754, 0.0
    %v779 = vmax.f32 %v755, 0.0
    %v780 = vmax.f32 %v756, 0.0
    %v781 = vmax.f32 %v757, 0.0
    %v782 = vmax.f32 %v758, 0.0
    %v783 = vmax.f32 %v759, 0.0
    %v784 = vmax.f32 %v760, 0.0
    %v785 = vmax.f32 %v761, 0.0
    %v786 = vmax.f32 %v762, 0.0
    %v787 = vmax.f32 %v763, 0.0
    %v788 = vmax.f32 %v764, 0.0
    %v789 = vmax.f32 %v765, 0.0
    %v790 = vmax.f32 %v766, 0.0
    %791 = vset.pattern.permute.xlu0 1
    %792 = vperm.xlu0 %791, %v551
    %v793 = vpop.permute.xlu0 %792
    %795 = vset.pattern.permute.xlu0 1
    %796 = vperm.xlu0 %795, %v552
    %v797 = vpop.permute.xlu0 %796
    %799 = vset.pattern.permute.xlu0 1
    %800 = vperm.xlu0 %799, %v553
    %v801 = vpop.permute.xlu0 %800
    %803 = vset.pattern.permute.xlu0 1
    %804 = vperm.xlu0 %803, %v554
    %v805 = vpop.permute.xlu0 %804
    %807 = vset.pattern.permute.xlu0 1
    %808 = vperm.xlu0 %807, %v555
    %v809 = vpop.permute.xlu0 %808
    %811 = vset.pattern.permute.xlu0 1
    %812 = vperm.xlu0 %811, %v556
    %v813 = vpop.permute.xlu0 %812
    %815 = vset.pattern.permute.xlu0 1
    %816 = vperm.xlu0 %815, %v557
    %v817 = vpop.permute.xlu0 %816
    %819 = vset.pattern.permute.xlu0 1
    %820 = vperm.xlu0 %819, %v558
    %v821 = vpop.permute.xlu0 %820
    %vm823 = vcmask 523264
    %v825 = vsel %vm823, %v767, 0
    %v828 = vsel %vm823, %v768, 0
    %v831 = vsel %vm823, %v769, 0
    %v834 = vsel %vm823, %v770, 0
    %v837 = vsel %vm823, %v771, 0
    %v840 = vsel %vm823, %v772, 0
    %v843 = vsel %vm823, %v773, 0
    %v846 = vsel %vm823, %v774, 0
    %848 = vmatprep.subr.mxu0 %v776
    %849 = vmatpush1.msra.mxu0 %v775
    %850 = vmatprep.subr.mxu0 %v778
    %851 = vmatpush1.msra.mxu0 %v777
    %852 = vmatprep.subr.mxu0 %v780
    %853 = vmatpush1.msra.mxu0 %v779
    %854 = vmatprep.subr.mxu0 %v782
    %855 = vmatpush1.msra.mxu0 %v781
    %856 = vmatprep.subr.mxu0 %v784
    %857 = vmatpush1.msra.mxu0 %v783
    %858 = vmatprep.subr.mxu0 %v786
    %859 = vmatpush1.msra.mxu0 %v785
    %860 = vmatprep.subr.mxu0 %v788
    %861 = vmatpush1.msra.mxu0 %v787
    %862 = vmatprep.subr.mxu0 %v790
    %863 = vmatpush1.msra.mxu0 %v789
    %864 = vmatprep.subr.mxu0 0.0
    %865 = vmatpush1.msra.mxu0 0.0
    %866 = vmatprep.subr.mxu0 0.0
    %867 = vmatpush1.msra.mxu0 0.0
    %868 = vmatprep.subr.mxu0 0.0
    %869 = vmatpush1.msra.mxu0 0.0
    %870 = vmatprep.subr.mxu0 0.0
    %871 = vmatpush1.msra.mxu0 0.0
    %872 = vmatprep.subr.mxu0 0.0
    %873 = vmatpush1.msra.mxu0 0.0
    %874 = vmatprep.subr.mxu0 0.0
    %875 = vmatpush1.msra.mxu0 0.0
    %876 = vmatprep.subr.mxu0 0.0
    %877 = vmatpush1.msra.mxu0 0.0
    %878 = vmatprep.subr.mxu0 0.0
    %879 = vmatpush1.msra.mxu0 0.0
    %880 = vmatprep.subr.mxu0 0.0
    %881 = vmatpush1.msra.mxu0 0.0
    %882 = vmatprep.subr.mxu0 0.0
    %883 = vmatpush1.msra.mxu0 0.0
    %884 = vmatprep.subr.mxu0 0.0
    %885 = vmatpush1.msra.mxu0 0.0
    %886 = vmatprep.subr.mxu0 0.0
    %887 = vmatpush1.msra.mxu0 0.0
    %888 = vmatprep.subr.mxu0 0.0
    %889 = vmatpush1.msra.mxu0 0.0
    %890 = vmatprep.subr.mxu0 0.0
    %891 = vmatpush1.msra.mxu0 0.0
    %892 = vmatprep.subr.mxu0 0.0
    %893 = vmatpush1.msra.mxu0 0.0
    %894 = vmatprep.subr.mxu0 0.0
    %895 = vmatpush1.msra.mxu0 0.0
    %896 = vmatprep.subr.mxu0 0.0
    %897 = vmatpush1.msra.mxu0 0.0
    %898 = vmatprep.subr.mxu0 0.0
    %899 = vmatpush1.msra.mxu0 0.0
    %900 = vmatprep.subr.mxu0 0.0
    %901 = vmatpush1.msra.mxu0 0.0
    %902 = vmatprep.subr.mxu0 0.0
    %903 = vmatpush1.msra.mxu0 0.0
    %904 = vmatprep.subr.mxu0 0.0
    %905 = vmatpush1.msra.mxu0 0.0
    %906 = vmatprep.subr.mxu0 0.0
    %907 = vmatpush1.msra.mxu0 0.0
    %908 = vmatprep.subr.mxu0 0.0
    %909 = vmatpush1.msra.mxu0 0.0
    %910 = vmatprep.subr.mxu0 0.0
    %911 = vmatpush1.msra.mxu0 0.0
    %912 = vmatprep.mubr.f32.mxu0 0.0
    %913 = vmatmul.mubr.f32.gmra.mrb[0].mxu0 %v825
    %v914 = vpop.f32.mrb[0].mxu0
    %v915 = vadd.f32 %v793, %v914
    %v916 = vpop.f32.mrb[0].mxu0
    %v917 = vadd.f32 %v793, %v916
    %918 = vmatprep.mubr.f32.mxu0 0.0
    %919 = vmatmul.mubr.f32.gmra.mrb[0].mxu0 %v828
    %v920 = vpop.f32.mrb[0].mxu0
    %v921 = vadd.f32 %v797, %v920
    %v922 = vpop.f32.mrb[0].mxu0
    %v923 = vadd.f32 %v797, %v922
    %924 = vmatprep.mubr.f32.mxu0 0.0
    %925 = vmatmul.mubr.f32.gmra.mrb[0].mxu0 %v831
    %v926 = vpop.f32.mrb[0].mxu0
    %v927 = vadd.f32 %v801, %v926
    %v928 = vpop.f32.mrb[0].mxu0
    %v929 = vadd.f32 %v801, %v928
    %930 = vmatprep.mubr.f32.mxu0 0.0
    %931 = vmatmul.mubr.f32.gmra.mrb[0].mxu0 %v834
    %v932 = vpop.f32.mrb[0].mxu0
    %v933 = vadd.f32 %v805, %v932
    %v934 = vpop.f32.mrb[0].mxu0
    %v935 = vadd.f32 %v805, %v934
    %936 = vmatprep.mubr.f32.mxu0 0.0
    %937 = vmatmul.mubr.f32.gmra.mrb[0].mxu0 %v837
    %v938 = vpop.f32.mrb[0].mxu0
    %v939 = vadd.f32 %v809, %v938
    %v940 = vpop.f32.mrb[0].mxu0
    %v941 = vadd.f32 %v809, %v940
    %942 = vmatprep.mubr.f32.mxu0 0.0
    %943 = vmatmul.mubr.f32.gmra.mrb[0].mxu0 %v840
    %v944 = vpop.f32.mrb[0].mxu0
    %v945 = vadd.f32 %v813, %v944
    %v946 = vpop.f32.mrb[0].mxu0
    %v947 = vadd.f32 %v813, %v946
    %948 = vmatprep.mubr.f32.mxu0 0.0
    %949 = vmatmul.mubr.f32.gmra.mrb[0].mxu0 %v843
    %v950 = vpop.f32.mrb[0].mxu0
    %v951 = vadd.f32 %v817, %v950
    %v952 = vpop.f32.mrb[0].mxu0
    %v953 = vadd.f32 %v817, %v952
    %954 = vmatprep.mubr.f32.mxu0 0.0
    %955 = vmatmul.mubr.f32.gmra.mrb[0].mxu0 %v846
    %v956 = vpop.f32.mrb[0].mxu0
    %v957 = vadd.f32 %v821, %v956
    %v958 = vpop.f32.mrb[0].mxu0
    %v959 = vadd.f32 %v821, %v958
    %960 = vdwg.mxu0
    %v961 = vld [vmem:[%s9] sm:$0xff]
    %v962 = vld [vmem:[%s9 + $0x8] sm:$0xff]
    %v963 = vld [vmem:[%s9 + $0x10] sm:$0xff]
    %v964 = vld [vmem:[%s9 + $0x18] sm:$0xff]
    %v965 = vld [vmem:[%s9 + $0x20] sm:$0xff]
    %v966 = vld [vmem:[%s9 + $0x28] sm:$0xff]
    %v967 = vld [vmem:[%s9 + $0x30] sm:$0xff]
    %v968 = vld [vmem:[%s9 + $0x38] sm:$0xff]
    %v969 = vmax.f32 %v915, 0.0
    %v970 = vmax.f32 %v917, 0.0
    %v971 = vmax.f32 %v921, 0.0
    %v972 = vmax.f32 %v923, 0.0
    %v973 = vmax.f32 %v927, 0.0
    %v974 = vmax.f32 %v929, 0.0
    %v975 = vmax.f32 %v933, 0.0
    %v976 = vmax.f32 %v935, 0.0
    %v977 = vmax.f32 %v939, 0.0
    %v978 = vmax.f32 %v941, 0.0
    %v979 = vmax.f32 %v945, 0.0
    %v980 = vmax.f32 %v947, 0.0
    %v981 = vmax.f32 %v951, 0.0
    %v982 = vmax.f32 %v953, 0.0
    %v983 = vmax.f32 %v957, 0.0
    %v984 = vmax.f32 %v959, 0.0
    %985 = vset.pattern.permute.xlu0 2
    %986 = vperm.xlu0 %985, %v551
    %v987 = vpop.permute.xlu0 %986
    %989 = vset.pattern.permute.xlu0 2
    %990 = vperm.xlu0 %989, %v552
    %v991 = vpop.permute.xlu0 %990
    %993 = vset.pattern.permute.xlu0 2
    %994 = vperm.xlu0 %993, %v553
    %v995 = vpop.permute.xlu0 %994
    %997 = vset.pattern.permute.xlu0 2
    %998 = vperm.xlu0 %997, %v554
    %v999 = vpop.permute.xlu0 %998
    %1001 = vset.pattern.permute.xlu0 2
    %1002 = vperm.xlu0 %1001, %v555
    %v1003 = vpop.permute.xlu0 %1002
    %1005 = vset.pattern.permute.xlu0 2
    %1006 = vperm.xlu0 %1005, %v556
    %v1007 = vpop.permute.xlu0 %1006
    %1009 = vset.pattern.permute.xlu0 2
    %1010 = vperm.xlu0 %1009, %v557
    %v1011 = vpop.permute.xlu0 %1010
    %1013 = vset.pattern.permute.xlu0 2
    %1014 = vperm.xlu0 %1013, %v558
    %v1015 = vpop.permute.xlu0 %1014
    %v1018 = vsel %vm823, %v961, 0
    %v1021 = vsel %vm823, %v962, 0
    %v1024 = vsel %vm823, %v963, 0
    %v1027 = vsel %vm823, %v964, 0
    %v1030 = vsel %vm823, %v965, 0
    %v1033 = vsel %vm823, %v966, 0
    %v1036 = vsel %vm823, %v967, 0
    %v1039 = vsel %vm823, %v968, 0
    %1041 = vmatprep.subr.mxu0 %v970
    %1042 = vmatpush1.msra.mxu0 %v969
    %1043 = vmatprep.subr.mxu0 %v972
    %1044 = vmatpush1.msra.mxu0 %v971
    %1045 = vmatprep.subr.mxu0 %v974
    %1046 = vmatpush1.msra.mxu0 %v973
    %1047 = vmatprep.subr.mxu0 %v976
    %1048 = vmatpush1.msra.mxu0 %v975
    %1049 = vmatprep.subr.mxu0 %v978
    %1050 = vmatpush1.msra.mxu0 %v977
    %1051 = vmatprep.subr.mxu0 %v980
    %1052 = vmatpush1.msra.mxu0 %v979
    %1053 = vmatprep.subr.mxu0 %v982
    %1054 = vmatpush1.msra.mxu0 %v981
    %1055 = vmatprep.subr.mxu0 %v984
    %1056 = vmatpush1.msra.mxu0 %v983
    %1057 = vmatprep.subr.mxu0 0.0
    %1058 = vmatpush1.msra.mxu0 0.0
    %1059 = vmatprep.subr.mxu0 0.0
    %1060 = vmatpush1.msra.mxu0 0.0
    %1061 = vmatprep.subr.mxu0 0.0
    %1062 = vmatpush1.msra.mxu0 0.0
    %1063 = vmatprep.subr.mxu0 0.0
    %1064 = vmatpush1.msra.mxu0 0.0
    %1065 = vmatprep.subr.mxu0 0.0
    %1066 = vmatpush1.msra.mxu0 0.0
    %1067 = vmatprep.subr.mxu0 0.0
    %1068 = vmatpush1.msra.mxu0 0.0
    %1069 = vmatprep.subr.mxu0 0.0
    %1070 = vmatpush1.msra.mxu0 0.0
    %1071 = vmatprep.subr.mxu0 0.0
    %1072 = vmatpush1.msra.mxu0 0.0
    %1073 = vmatprep.subr.mxu0 0.0
    %1074 = vmatpush1.msra.mxu0 0.0
    %1075 = vmatprep.subr.mxu0 0.0
    %1076 = vmatpush1.msra.mxu0 0.0
    %1077 = vmatprep.subr.mxu0 0.0
    %1078 = vmatpush1.msra.mxu0 0.0
    %1079 = vmatprep.subr.mxu0 0.0
    %1080 = vmatpush1.msra.mxu0 0.0
    %1081 = vmatprep.subr.mxu0 0.0
    %1082 = vmatpush1.msra.mxu0 0.0
    %1083 = vmatprep.subr.mxu0 0.0
    %1084 = vmatpush1.msra.mxu0 0.0
    %1085 = vmatprep.subr.mxu0 0.0
    %1086 = vmatpush1.msra.mxu0 0.0
    %1087 = vmatprep.subr.mxu0 0.0
    %1088 = vmatpush1.msra.mxu0 0.0
    %1089 = vmatprep.subr.mxu0 0.0
    %1090 = vmatpush1.msra.mxu0 0.0
    %1091 = vmatprep.subr.mxu0 0.0
    %1092 = vmatpush1.msra.mxu0 0.0
    %1093 = vmatprep.subr.mxu0 0.0
    %1094 = vmatpush1.msra.mxu0 0.0
    %1095 = vmatprep.subr.mxu0 0.0
    %1096 = vmatpush1.msra.mxu0 0.0
    %1097 = vmatprep.subr.mxu0 0.0
    %1098 = vmatpush1.msra.mxu0 0.0
    %1099 = vmatprep.subr.mxu0 0.0
    %1100 = vmatpush1.msra.mxu0 0.0
    %1101 = vmatprep.subr.mxu0 0.0
    %1102 = vmatpush1.msra.mxu0 0.0
    %1103 = vmatprep.subr.mxu0 0.0
    %1104 = vmatpush1.msra.mxu0 0.0
    %1105 = vmatprep.mubr.f32.mxu0 0.0
    %1106 = vmatmul.mubr.f32.gmra.mrb[0].mxu0 %v1018
    %v1107 = vpop.f32.mrb[0].mxu0
    %v1108 = vadd.f32 %v987, %v1107
    %v1109 = vpop.f32.mrb[0].mxu0
    %v1110 = vadd.f32 %v987, %v1109
    %1111 = vmatprep.mubr.f32.mxu0 0.0
    %1112 = vmatmul.mubr.f32.gmra.mrb[0].mxu0 %v1021
    %v1113 = vpop.f32.mrb[0].mxu0
    %v1114 = vadd.f32 %v991, %v1113
    %v1115 = vpop.f32.mrb[0].mxu0
    %v1116 = vadd.f32 %v991, %v1115
    %1117 = vmatprep.mubr.f32.mxu0 0.0
    %1118 = vmatmul.mubr.f32.gmra.mrb[0].mxu0 %v1024
    %v1119 = vpop.f32.mrb[0].mxu0
    %v1120 = vadd.f32 %v995, %v1119
    %v1121 = vpop.f32.mrb[0].mxu0
    %v1122 = vadd.f32 %v995, %v1121
    %1123 = vmatprep.mubr.f32.mxu0 0.0
    %1124 = vmatmul.mubr.f32.gmra.mrb[0].mxu0 %v1027
    %v1125 = vpop.f32.mrb[0].mxu0
    %v1126 = vadd.f32 %v999, %v1125
    %v1127 = vpop.f32.mrb[0].mxu0
    %v1128 = vadd.f32 %v999, %v1127
    %1129 = vmatprep.mubr.f32.mxu0 0.0
    %1130 = vmatmul.mubr.f32.gmra.mrb[0].mxu0 %v1030
    %v1131 = vpop.f32.mrb[0].mxu0
    %v1132 = vadd.f32 %v1003, %v1131
    %v1133 = vpop.f32.mrb[0].mxu0
    %v1134 = vadd.f32 %v1003, %v1133
    %1135 = vmatprep.mubr.f32.mxu0 0.0
    %1136 = vmatmul.mubr.f32.gmra.mrb[0].mxu0 %v1033
    %v1137 = vpop.f32.mrb[0].mxu0
    %v1138 = vadd.f32 %v1007, %v1137
    %v1139 = vpop.f32.mrb[0].mxu0
    %v1140 = vadd.f32 %v1007, %v1139
    %1141 = vmatprep.mubr.f32.mxu0 0.0
    %1142 = vmatmul.mubr.f32.gmra.mrb[0].mxu0 %v1036
    %v1143 = vpop.f32.mrb[0].mxu0
    %v1144 = vadd.f32 %v1011, %v1143
    %v1145 = vpop.f32.mrb[0].mxu0
    %v1146 = vadd.f32 %v1011, %v1145
    %1147 = vmatprep.mubr.f32.mxu0 0.0
    %1148 = vmatmul.mubr.f32.gmra.mrb[0].mxu0 %v1039
    %v1149 = vpop.f32.mrb[0].mxu0
    %v1150 = vadd.f32 %v1015, %v1149
    %v1151 = vpop.f32.mrb[0].mxu0
    %v1152 = vadd.f32 %v1015, %v1151
    %1153 = vdwg.mxu0
    %v1154 = vadd.f32 %v751, %v1108
    %v1155 = vadd.f32 %v752, %v1110
    %v1156 = vadd.f32 %v753, %v1114
    %v1157 = vadd.f32 %v754, %v1116
    %v1158 = vadd.f32 %v755, %v1120
    %v1159 = vadd.f32 %v756, %v1122
    %v1160 = vadd.f32 %v757, %v1126
    %v1161 = vadd.f32 %v758, %v1128
    %v1162 = vadd.f32 %v759, %v1132
    %v1163 = vadd.f32 %v760, %v1134
    %v1164 = vadd.f32 %v761, %v1138
    %v1165 = vadd.f32 %v762, %v1140
    %v1166 = vadd.f32 %v763, %v1144
    %v1167 = vadd.f32 %v764, %v1146
    %v1168 = vadd.f32 %v765, %v1150
    %v1169 = vadd.f32 %v766, %v1152
    %v1170 = vld [vmem:[%s10] sm:$0x3]
    %v1171 = vmax.f32 %v1154, 0.0
    %v1172 = vmax.f32 %v1155, 0.0
    %v1173 = vmax.f32 %v1156, 0.0
    %v1174 = vmax.f32 %v1157, 0.0
    %v1175 = vmax.f32 %v1158, 0.0
    %v1176 = vmax.f32 %v1159, 0.0
    %v1177 = vmax.f32 %v1160, 0.0
    %v1178 = vmax.f32 %v1161, 0.0
    %v1179 = vmax.f32 %v1162, 0.0
    %v1180 = vmax.f32 %v1163, 0.0
    %v1181 = vmax.f32 %v1164, 0.0
    %v1182 = vmax.f32 %v1165, 0.0
    %v1183 = vmax.f32 %v1166, 0.0
    %v1184 = vmax.f32 %v1167, 0.0
    %v1185 = vmax.f32 %v1168, 0.0
    %v1186 = vmax.f32 %v1169, 0.0
    %1187 = vset.pattern.permute.xlu0 3
    %1188 = vperm.xlu0 %1187, %v551
    %v1189 = vpop.permute.xlu0 %1188
    %v1192 = vsel %vm823, %v1170, 0
    %1194 = vmatprep.subr.mxu0 %v1172
    %1195 = vmatpush1.msra.mxu0 %v1171
    %1196 = vmatprep.subr.mxu0 %v1174
    %1197 = vmatpush1.msra.mxu0 %v1173
    %1198 = vmatprep.subr.mxu0 %v1176
    %1199 = vmatpush1.msra.mxu0 %v1175
    %1200 = vmatprep.subr.mxu0 %v1178
    %1201 = vmatpush1.msra.mxu0 %v1177
    %1202 = vmatprep.subr.mxu0 %v1180
    %1203 = vmatpush1.msra.mxu0 %v1179
    %1204 = vmatprep.subr.mxu0 %v1182
    %1205 = vmatpush1.msra.mxu0 %v1181
    %1206 = vmatprep.subr.mxu0 %v1184
    %1207 = vmatpush1.msra.mxu0 %v1183
    %1208 = vmatprep.subr.mxu0 %v1186
    %1209 = vmatpush1.msra.mxu0 %v1185
    %1210 = vmatprep.subr.mxu0 0.0
    %1211 = vmatpush1.msra.mxu0 0.0
    %1212 = vmatprep.subr.mxu0 0.0
    %1213 = vmatpush1.msra.mxu0 0.0
    %1214 = vmatprep.subr.mxu0 0.0
    %1215 = vmatpush1.msra.mxu0 0.0
    %1216 = vmatprep.subr.mxu0 0.0
    %1217 = vmatpush1.msra.mxu0 0.0
    %1218 = vmatprep.subr.mxu0 0.0
    %1219 = vmatpush1.msra.mxu0 0.0
    %1220 = vmatprep.subr.mxu0 0.0
    %1221 = vmatpush1.msra.mxu0 0.0
    %1222 = vmatprep.subr.mxu0 0.0
    %1223 = vmatpush1.msra.mxu0 0.0
    %1224 = vmatprep.subr.mxu0 0.0
    %1225 = vmatpush1.msra.mxu0 0.0
    %1226 = vmatprep.subr.mxu0 0.0
    %1227 = vmatpush1.msra.mxu0 0.0
    %1228 = vmatprep.subr.mxu0 0.0
    %1229 = vmatpush1.msra.mxu0 0.0
    %1230 = vmatprep.subr.mxu0 0.0
    %1231 = vmatpush1.msra.mxu0 0.0
    %1232 = vmatprep.subr.mxu0 0.0
    %1233 = vmatpush1.msra.mxu0 0.0
    %1234 = vmatprep.subr.mxu0 0.0
    %1235 = vmatpush1.msra.mxu0 0.0
    %1236 = vmatprep.subr.mxu0 0.0
    %1237 = vmatpush1.msra.mxu0 0.0
    %1238 = vmatprep.subr.mxu0 0.0
    %1239 = vmatpush1.msra.mxu0 0.0
    %1240 = vmatprep.subr.mxu0 0.0
    %1241 = vmatpush1.msra.mxu0 0.0
    %1242 = vmatprep.subr.mxu0 0.0
    %1243 = vmatpush1.msra.mxu0 0.0
    %1244 = vmatprep.subr.mxu0 0.0
    %1245 = vmatpush1.msra.mxu0 0.0
    %1246 = vmatprep.subr.mxu0 0.0
    %1247 = vmatpush1.msra.mxu0 0.0
    %1248 = vmatprep.subr.mxu0 0.0
    %1249 = vmatpush1.msra.mxu0 0.0
    %1250 = vmatprep.subr.mxu0 0.0
    %1251 = vmatpush1.msra.mxu0 0.0
    %1252 = vmatprep.subr.mxu0 0.0
    %1253 = vmatpush1.msra.mxu0 0.0
    %1254 = vmatprep.subr.mxu0 0.0
    %1255 = vmatpush1.msra.mxu0 0.0
    %1256 = vmatprep.subr.mxu0 0.0
    %1257 = vmatpush1.msra.mxu0 0.0
    %1258 = vmatprep.mubr.f32.mxu0 0.0
    %1259 = vmatmul.mubr.f32.gmra.mrb[0].mxu0 %v1192
    %v1260 = vpop.f32.mrb[0].mxu0
    %v1261 = vadd.f32 %v1189, %v1260
    %v1262 = vpop.f32.mrb[0].mxu0
    %v1263 = vadd.f32 %v1189, %v1262
    %1264 = vdwg.mxu0
    %v1265 = vxor.u32 %v1261, 2147483648
    %v1266 = vxor.u32 %v1263, 2147483648
    %v1267 = vmul.f32 %v1265, 1.442695
    %v1268 = vpow.pop %v1267
    %v1269 = vmul.f32 %v1266, 1.442695
    %v1270 = vpow.pop %v1269
    %v1271 = vadd.f32 %v1268, 1.0
    %v1272 = vadd.f32 %v1270, 1.0
    %v1273 = vrcp.pop %v1271
    %v1274 = vmul.f32 1.0, %v1273
    %v1275 = vrcp.pop %v1272
    %v1276 = vmul.f32 1.0, %v1275
    %v1277 = vmax.f32 %v1261, 0.0
    %v1278 = vmax.f32 %v1263, 0.0
    %vm1279 = vcmp.ne.f32.partialorder %v1261, %v1261
    %vm1280 = vcmp.ne.f32.partialorder %v1263, %v1263
    %v1281 = vadd.f32 %v1261, 0.0
    %v1282 = vadd.f32 %v1263, 0.0
    %v1283 = vand.u32 2147483647, %v1261
    %v1284 = vand.u32 2147483647, %v1263
    %v1285 = vsub.f32 0.0, %v1283
    %v1286 = vsub.f32 0.0, %v1284
    %v1287 = vmul.f32 %v1285, 1.442695
    %v1288 = vpow.pop %v1287
    %v1289 = vmul.f32 %v1286, 1.442695
    %v1290 = vpow.pop %v1289
    %v1291 = vadd.f32 %v1288, 1.0
    %v1292 = vlog2.pop %v1291
    %v1293 = vmul.f32 %v1292, 0.6931472
    %v1294 = vmul.f32 -0.5, %v1288
    %v1295 = vadd.f32 %v1294, 1.0
    %v1296 = vmul.f32 %v1295, %v1288
    %v1297 = vand.u32 2147483647, %v1288
    %vm1298 = vcmp.lt.f32.partialorder %v1297, 0.0004427343
    %v1299 = vsel %vm1298, %v1296, %v1293
    %v1300 = vadd.f32 %v1290, 1.0
    %v1301 = vlog2.pop %v1300
    %v1302 = vmul.f32 %v1301, 0.6931472
    %v1303 = vmul.f32 -0.5, %v1290
    %v1304 = vadd.f32 %v1303, 1.0
    %v1305 = vmul.f32 %v1304, %v1290
    %v1306 = vand.u32 2147483647, %v1290
    %vm1307 = vcmp.lt.f32.partialorder %v1306, 0.0004427343
    %v1308 = vsel %vm1307, %v1305, %v1302
    %v1309 = vadd.f32 %v1277, %v1299
    %v1310 = vadd.f32 %v1278, %v1308
    %v1311 = vsel %vm1279, %v1281, %v1309
    %v1312 = vsel %vm1280, %v1282, %v1310
    %v1313 = vadd.f32 %v1311, 1.0
    %v1314 = vadd.f32 %v1312, 1.0
    %v1315 = vrcp.pop %v1313
    %v1316 = vrcp.pop %v1314
    %v1317 = vmul.f32 %v1311, %v1315
    %v1318 = vmul.f32 %v1312, %v1316
    %1319 = vst [vmem:[#allocation2] sm:$0x1] %v1274
    %1320 = vst [vmem:[#allocation4 - $0x1] sm:$0x2] %v1317
    %1321 = vst [vmem:[#allocation2 + $0x1] sm:$0x1] %v1276
    %1322 = vst [vmem:[#allocation4] sm:$0x2] %v1318
    // Predicated region
    $region50: #{tpu_custom_call.1} parent=1 // pred_check
      _
    $region51: #{tpu_custom_call.1} parent=1 // pred_check_branch
      %1324 = sbr.rel (0) target = $region53
    $region52: #{tpu_custom_call.1} parent=1 // pred_region
      %s1326 = ssub.s32 32, 32
      %1327 = vsyncadd [#allocation3], %s1326
      %s1329 = sshll.u32 [#allocation2], 4
      %s1330 = int_to_ptr.vmem [resolvable:$true] %s1329
      %1332 = dma.vmem_to_hbm [thread:$0]  %s1330, 32, %s12, [#allocation3]
    $region53: #{tpu_custom_call.1} parent=1 // pred_fallthru
      _
    // Predicated region
    $region54: #{tpu_custom_call.1} parent=1 // pred_check
      _
    $region55: #{tpu_custom_call.1} parent=1 // pred_check_branch
      %1334 = sbr.rel (0) target = $region57
    $region56: #{tpu_custom_call.1} parent=1 // pred_region
      %s1336 = ssub.s32 32, 32
      %1337 = vsyncadd [#allocation5], %s1336
      %s1339 = sshll.u32 [#allocation4], 4
      %s1340 = int_to_ptr.vmem [resolvable:$true] %s1339
      %1342 = dma.vmem_to_hbm [thread:$0]  %s1340, 32, %s13, [#allocation5]
    $region57: #{tpu_custom_call.1} parent=1 // pred_fallthru
      _
    // Predicated region
    $region58: #{tpu_custom_call.1} parent=1 // pred_check
      _
    $region59: #{tpu_custom_call.1} parent=1 // pred_check_branch
      %1344 = sbr.rel (0) target = $region61
    $region60: #{tpu_custom_call.1} parent=1 // pred_region
      %1345 = dma.done [#allocation3], 32
    $region61: #{tpu_custom_call.1} parent=1 // pred_fallthru
      _
    // Predicated region
    $region62: #{tpu_custom_call.1} parent=1 // pred_check
      _
    $region63: #{tpu_custom_call.1} parent=1 // pred_check_branch
      %1347 = sbr.rel (0) target = $region65
    $region64: #{tpu_custom_call.1} parent=1 // pred_region
      %1348 = dma.done [#allocation5], 32
    $region65: #{tpu_custom_call.1} parent=1 // pred_fallthru
      _
    %1349 = vsyncpa [#allocation3], 1
    %1350 = vsyncpa [#allocation5], 1

</llo_original>
